<compile_context>
chip_gen: v7x
topology: tpu7x:2x2x1
jax: 0.10.0
libtpu: 0.0.40
codegen_flags: <defaults>
</compile_context>

<pallas_src>
import jax
import jax.numpy as jnp
from jax import lax
from jax.experimental import pallas as pl
from jax.experimental.pallas import tpu as pltpu


def _round_up(x, m):
    return ((x + m - 1) // m) * m


def _make_gru_kernel(time_chunk, hp):
    """Build the chunked-recurrence kernel for a given time-chunk and padded H."""

    def kernel(maxlen_ref, gi_ref, whh_ref, bhh_ref, len_ref, out_ref):
        # maxlen_ref : (1,) int32 in SMEM (scalar prefetch) -- max(seqlens)
        # gi_ref     : (TC, BB, 3*HP) f32  precomputed input-gate activations
        # whh_ref    : (HP, 3*HP) f32     hidden->hidden weights, gates (r,z,n)
        # bhh_ref    : (1, 3*HP) f32
        # len_ref    : (BB, 1) int32      sequence lengths
        # out_ref    : (BB, HP) f32       doubles as the resident hidden state
        c = pl.program_id(1)

        @pl.when(c == 0)
        def _init():
            out_ref[...] = jnp.zeros_like(out_ref)

        chunk_start = c * time_chunk

        # Skip chunks that are entirely beyond every sequence's length.
        @pl.when(chunk_start < maxlen_ref[0])
        def _chunk():
            lens = len_ref[...]          # (BB, 1)
            whh = whh_ref[...]           # (HP, 3*HP)
            bhh = bhh_ref[...]           # (1, 3*HP)

            def step(i, h):
                gi_t = gi_ref[i]         # (BB, 3*HP)
                gh = jnp.dot(h, whh, preferred_element_type=jnp.float32) + bhh
                # Lane-aligned gate slices (each gate block is HP wide, HP % 128 == 0).
                i_r = gi_t[:, 0 * hp:1 * hp]
                i_z = gi_t[:, 1 * hp:2 * hp]
                i_n = gi_t[:, 2 * hp:3 * hp]
                h_r = gh[:, 0 * hp:1 * hp]
                h_z = gh[:, 1 * hp:2 * hp]
                h_n = gh[:, 2 * hp:3 * hp]
                r = jax.nn.sigmoid(i_r + h_r)
                z = jax.nn.sigmoid(i_z + h_z)
                n = jnp.tanh(i_n + r * h_n)
                h_new = (1.0 - z) * n + z * h
                # Freeze hidden state for padded positions (t >= seqlen), which
                # reproduces pack_padded_sequence's last_hidden semantics.
                keep = (chunk_start + i) < lens          # (BB, 1) broadcasts over HP
                return jnp.where(keep, h_new, h)

            out_ref[...] = lax.fori_loop(0, time_chunk, step, out_ref[...],
                                         unroll=True)

    return kernel


def g2p_encoder_forward(input_ids, seqlens, emb_table, w_ih, w_hh, b_ih, b_hh,
                        *, time_chunk=16):
    """input_ids: (B, T) int32, seqlens: (B,) int32.

    emb_table: (V, E);  w_ih: (3H, E);  w_hh: (3H, H);  b_ih, b_hh: (3H,)
    Returns (B, H) float32 == G2PEncoder.forward's last_hidden output.
    """
    B, T = input_ids.shape
    V, E = emb_table.shape
    H = w_hh.shape[1]

    HP = _round_up(H, 128)            # lane-pad each gate block
    BP = _round_up(B, 8)              # sublane-pad the batch
    TC = min(time_chunk, T)
    TP = _round_up(T, TC)
    n_chunks = TP // TC

    # Batch block: one block unless the padded batch is big enough to split
    # (>=2 blocks lets v7x's two TensorCores each take half the batch).
    BB = BP
    for cand in (256, 128, 64, 32, 16):
        if BP % cand == 0 and BP // cand >= 2:
            BB = cand
            break
    n_bb = BP // BB

    f32 = jnp.float32

    # --- Glue in plain JAX: embedding lookup + hoisted input projection. ---
    x = jnp.take(emb_table, input_ids, axis=0).astype(f32)              # (B, T, E)
    gi = jnp.einsum("bte,ge->btg", x, w_ih.astype(f32),
                    precision=lax.Precision.HIGHEST) + b_ih.astype(f32)  # (B, T, 3H)
    gi = gi.reshape(B, T, 3, H)

    # Time-major, gate-major lane-padded layout: (TP, BP, 3*HP).
    gi_pad = jnp.zeros((TP, BP, 3, HP), f32)
    gi_pad = gi_pad.at[:T, :B, :, :H].set(jnp.transpose(gi, (1, 0, 2, 3)))
    gi_pad = gi_pad.reshape(TP, BP, 3 * HP)

    whh_pad = jnp.zeros((HP, 3, HP), f32)
    whh_pad = whh_pad.at[:H, :, :H].set(w_hh.astype(f32).T.reshape(H, 3, H))
    whh_pad = whh_pad.reshape(HP, 3 * HP)

    bhh_pad = jnp.zeros((1, 3, HP), f32)
    bhh_pad = bhh_pad.at[0, :, :H].set(b_hh.astype(f32).reshape(3, H))
    bhh_pad = bhh_pad.reshape(1, 3 * HP)

    lens_pad = jnp.zeros((BP, 1), jnp.int32).at[:B, 0].set(seqlens.astype(jnp.int32))
    max_len = jnp.max(seqlens).astype(jnp.int32).reshape(1)

    kernel = _make_gru_kernel(TC, HP)

    grid_spec = pltpu.PrefetchScalarGridSpec(
        num_scalar_prefetch=1,                       # max_len -> SMEM
        grid=(n_bb, n_chunks),                       # (batch blocks, time chunks)
        in_specs=[
            pl.BlockSpec((TC, BB, 3 * HP), lambda b, c, ml: (c, b, 0)),  # gi
            pl.BlockSpec((HP, 3 * HP), lambda b, c, ml: (0, 0)),         # W_hh^T
            pl.BlockSpec((1, 3 * HP), lambda b, c, ml: (0, 0)),          # b_hh
            pl.BlockSpec((BB, 1), lambda b, c, ml: (b, 0)),              # seqlens
        ],
        out_specs=pl.BlockSpec((BB, HP), lambda b, c, ml: (b, 0)),       # hidden acc
    )

    out_pad = pl.pallas_call(
        kernel,
        out_shape=jax.ShapeDtypeStruct((BP, HP), f32),
        grid_spec=grid_spec,
        compiler_params=pltpu.CompilerParams(
            dimension_semantics=("parallel", "arbitrary"),
        ),
    )(max_len, gi_pad, whh_pad, bhh_pad, lens_pad)

    return out_pad[:B, :H]


def _gru_reference(input_ids, seqlens, emb_table, w_ih, w_hh, b_ih, b_hh):
    """Pure-JAX reference mirroring PyTorch nn.GRU + pack_padded last_hidden."""
    B, T = input_ids.shape
    H = w_hh.shape[1]
    x = jnp.take(emb_table, input_ids, axis=0).astype(jnp.float32)
    h = jnp.zeros((B, H), jnp.float32)
    hp = lax.Precision.HIGHEST
    for t in range(T):
        xt = x[:, t, :]
        gi = jnp.dot(xt, w_ih.T, precision=hp) + b_ih
        gh = jnp.dot(h, w_hh.T, precision=hp) + b_hh
        i_r, i_z, i_n = jnp.split(gi, 3, axis=-1)
        h_r, h_z, h_n = jnp.split(gh, 3, axis=-1)
        r = jax.nn.sigmoid(i_r + h_r)
        z = jax.nn.sigmoid(i_z + h_z)
        n = jnp.tanh(i_n + r * h_n)
        h_new = (1.0 - z) * n + z * h
        mask = (t < seqlens)[:, None]
        h = jnp.where(mask, h_new, h)
    return h


if __name__ == "__main__":
    # Small deterministic shapes consistent with the module (H == embedding dim).
    B, T = 8, 8          # batch, max sequence length
    V, E = 20, 32        # vocab size, embedding dim
    H = E

    key = jax.random.PRNGKey(0)
    k_emb, k_wih, k_whh, k_bih, k_bhh, k_ids, k_len = jax.random.split(key, 7)

    scale = float(1.0 / (H ** 0.5))
    emb_table = jax.random.normal(k_emb, (V, E), dtype=jnp.float32) * 0.1
    w_ih = jax.random.uniform(k_wih, (3 * H, E), minval=-scale, maxval=scale)
    w_hh = jax.random.uniform(k_whh, (3 * H, H), minval=-scale, maxval=scale)
    b_ih = jax.random.uniform(k_bih, (3 * H,), minval=-scale, maxval=scale)
    b_hh = jax.random.uniform(k_bhh, (3 * H,), minval=-scale, maxval=scale)

    input_ids = jax.random.randint(k_ids, (B, T), 0, V, dtype=jnp.int32)
    seqlens = jax.random.randint(k_len, (B,), 1, T + 1, dtype=jnp.int32)

    fwd = jax.jit(g2p_encoder_forward)
    out = fwd(input_ids, seqlens, emb_table, w_ih, w_hh, b_ih, b_hh)
    out = jax.block_until_ready(out)

    assert out.shape == (B, H) and out.dtype == jnp.float32

    ref = _gru_reference(input_ids, seqlens, emb_table, w_ih, w_hh, b_ih, b_hh)
    ref = jax.block_until_ready(ref)
    assert jnp.allclose(out, ref, rtol=1e-3, atol=1e-3), "kernel/reference mismatch"

    print("KERNEL_OK")
</pallas_src>

<mosaic_0001>
module attributes {stable_mosaic.version = 11 : i64} {
  func.func @kernel(%arg0: i32, %arg1: i32, %arg2: memref<1xi32, #tpu.memory_space<smem>>, %arg3: memref<8x8x384xf32, #tpu.memory_space<vmem>>, %arg4: memref<128x384xf32, #tpu.memory_space<vmem>>, %arg5: memref<1x384xf32, #tpu.memory_space<vmem>>, %arg6: memref<8x1xi32, #tpu.memory_space<vmem>>, %arg7: memref<8x128xf32, #tpu.memory_space<vmem>>) attributes {dimension_semantics = [#tpu.dimension_semantics<parallel>, #tpu.dimension_semantics<arbitrary>], iteration_bounds = array<i64: 1, 1>, scalar_prefetch = 1 : i64, scratch_operands = 0 : i64, tpu.core_type = #tpu.core_type<tc>, window_params = [{transform_indices = @transform_0, window_bounds = array<i64: 8, 8, 384>}, {pipeline_mode = #tpu.pipeline_mode<synchronous>, transform_indices = @transform_1, window_bounds = array<i64: 128, 384>}, {pipeline_mode = #tpu.pipeline_mode<synchronous>, transform_indices = @transform_2, window_bounds = array<i64: 1, 384>}, {transform_indices = @transform_3, window_bounds = array<i64: 8, 1>}, {transform_indices = @transform_4, window_bounds = array<i64: 8, 128>}]} {
    %c0_i32 = arith.constant 0 : i32
    %0 = arith.cmpi eq, %arg1, %c0_i32 : i32
    %1 = arith.extui %0 : i1 to i32
    %c0_i32_0 = arith.constant 0 : i32
    %2 = arith.cmpi ne, %1, %c0_i32_0 : i32
    scf.if %2 {
      %cst = arith.constant 0.000000e+00 : f32
      %8 = vector.broadcast %cst : f32 to vector<8x128xf32>
      %c0_2 = arith.constant 0 : index
      %c0_3 = arith.constant 0 : index
      %9 = vector.load %arg7[%c0_2, %c0_3] : memref<8x128xf32, #tpu.memory_space<vmem>>, vector<8x128xf32>
      tpu.vector_store %arg7[%c0_2, %c0_3], %8 {strides = array<i32>} : memref<8x128xf32, #tpu.memory_space<vmem>>, vector<8x128xf32>,
    } else {
    }
    %c8_i32 = arith.constant 8 : i32
    %3 = arith.muli %arg1, %c8_i32 : i32
    %c0 = arith.constant 0 : index
    %4 = memref.load %arg2[%c0] : memref<1xi32, #tpu.memory_space<smem>>
    %5 = arith.cmpi slt, %3, %4 : i32
    %6 = arith.extui %5 : i1 to i32
    %c0_i32_1 = arith.constant 0 : i32
    %7 = arith.cmpi ne, %6, %c0_i32_1 : i32
    scf.if %7 {
      %c0_2 = arith.constant 0 : index
      %c0_3 = arith.constant 0 : index
      %8 = vector.load %arg6[%c0_2, %c0_3] : memref<8x1xi32, #tpu.memory_space<vmem>>, vector<8x1xi32>
      %c0_4 = arith.constant 0 : index
      %c0_5 = arith.constant 0 : index
      %9 = vector.load %arg4[%c0_4, %c0_5] : memref<128x384xf32, #tpu.memory_space<vmem>>, vector<128x384xf32>
      %c0_6 = arith.constant 0 : index
      %c0_7 = arith.constant 0 : index
      %10 = vector.load %arg5[%c0_6, %c0_7] : memref<1x384xf32, #tpu.memory_space<vmem>>, vector<1x384xf32>
      %c0_8 = arith.constant 0 : index
      %c0_9 = arith.constant 0 : index
      %11 = vector.load %arg7[%c0_8, %c0_9] : memref<8x128xf32, #tpu.memory_space<vmem>>, vector<8x128xf32>
      %c0_i32_10 = arith.constant 0 : i32
      %12 = arith.index_cast %c0_i32_10 : i32 to index
      %c0_11 = arith.constant 0 : index
      %c0_12 = arith.constant 0 : index
      %13 = vector.load %arg3[%12, %c0_11, %c0_12] : memref<8x8x384xf32, #tpu.memory_space<vmem>>, vector<1x8x384xf32>
      %14 = vector.shape_cast %13 : vector<1x8x384xf32> to vector<8x384xf32>
      %cst = arith.constant dense<0.000000e+00> : vector<8x384xf32>
      %15 = tpu.matmul %11, %9, %cst {dimension_numbers = #tpu.dot_dimension_numbers<[1], [0], [0], [1], [0, 0, 1, 1], [], []>} : vector<8x128xf32>, vector<128x384xf32>, vector<8x384xf32> -> vector<8x384xf32>
      %16 = vector.broadcast %10 : vector<1x384xf32> to vector<8x384xf32>
      %17 = arith.addf %15, %16 : vector<8x384xf32>
      %18 = vector.extract_strided_slice %14 {offsets = [0, 0], sizes = [8, 128], strides = [1, 1]} : vector<8x384xf32> to vector<8x128xf32>
      %19 = vector.extract_strided_slice %14 {offsets = [0, 128], sizes = [8, 128], strides = [1, 1]} : vector<8x384xf32> to vector<8x128xf32>
      %20 = vector.extract_strided_slice %14 {offsets = [0, 256], sizes = [8, 128], strides = [1, 1]} : vector<8x384xf32> to vector<8x128xf32>
      %21 = vector.extract_strided_slice %17 {offsets = [0, 0], sizes = [8, 128], strides = [1, 1]} : vector<8x384xf32> to vector<8x128xf32>
      %22 = vector.extract_strided_slice %17 {offsets = [0, 128], sizes = [8, 128], strides = [1, 1]} : vector<8x384xf32> to vector<8x128xf32>
      %23 = vector.extract_strided_slice %17 {offsets = [0, 256], sizes = [8, 128], strides = [1, 1]} : vector<8x384xf32> to vector<8x128xf32>
      %24 = arith.addf %18, %21 : vector<8x128xf32>
      %25 = arith.negf %24 : vector<8x128xf32>
      %26 = math.exp %25 : vector<8x128xf32>
      %cst_13 = arith.constant 1.000000e+00 : f32
      %27 = vector.broadcast %cst_13 : f32 to vector<8x128xf32>
      %28 = arith.addf %27, %26 : vector<8x128xf32>
      %29 = arith.divf %27, %28 : vector<8x128xf32>
      %30 = arith.addf %19, %22 : vector<8x128xf32>
      %31 = arith.negf %30 : vector<8x128xf32>
      %32 = math.exp %31 : vector<8x128xf32>
      %cst_14 = arith.constant 1.000000e+00 : f32
      %33 = vector.broadcast %cst_14 : f32 to vector<8x128xf32>
      %34 = arith.addf %33, %32 : vector<8x128xf32>
      %35 = arith.divf %33, %34 : vector<8x128xf32>
      %36 = arith.mulf %29, %23 : vector<8x128xf32>
      %37 = arith.addf %20, %36 : vector<8x128xf32>
      %38 = math.tanh %37 : vector<8x128xf32>
      %cst_15 = arith.constant 1.000000e+00 : f32
      %39 = vector.broadcast %cst_15 : f32 to vector<8x128xf32>
      %40 = arith.subf %39, %35 : vector<8x128xf32>
      %41 = arith.mulf %40, %38 : vector<8x128xf32>
      %42 = arith.mulf %35, %11 : vector<8x128xf32>
      %43 = arith.addf %41, %42 : vector<8x128xf32>
      %44 = arith.addi %3, %c0_i32_10 : i32
      %45 = vector.broadcast %44 : i32 to vector<8x1xi32>
      %46 = arith.cmpi slt, %45, %8 : vector<8x1xi32>
      %47 = vector.shape_cast %46 : vector<8x1xi1> to vector<8x1xi1>
      %48 = vector.broadcast %47 : vector<8x1xi1> to vector<8x128xi1>
      %49 = arith.select %48, %43, %11 : vector<8x128xi1>, vector<8x128xf32>
      %c1_i32 = arith.constant 1 : i32
      %50 = arith.index_cast %c1_i32 : i32 to index
      %c0_16 = arith.constant 0 : index
      %c0_17 = arith.constant 0 : index
      %51 = vector.load %arg3[%50, %c0_16, %c0_17] : memref<8x8x384xf32, #tpu.memory_space<vmem>>, vector<1x8x384xf32>
      %52 = vector.shape_cast %51 : vector<1x8x384xf32> to vector<8x384xf32>
      %cst_18 = arith.constant dense<0.000000e+00> : vector<8x384xf32>
      %53 = tpu.matmul %49, %9, %cst_18 {dimension_numbers = #tpu.dot_dimension_numbers<[1], [0], [0], [1], [0, 0, 1, 1], [], []>} : vector<8x128xf32>, vector<128x384xf32>, vector<8x384xf32> -> vector<8x384xf32>
      %54 = vector.broadcast %10 : vector<1x384xf32> to vector<8x384xf32>
      %55 = arith.addf %53, %54 : vector<8x384xf32>
      %56 = vector.extract_strided_slice %52 {offsets = [0, 0], sizes = [8, 128], strides = [1, 1]} : vector<8x384xf32> to vector<8x128xf32>
      %57 = vector.extract_strided_slice %52 {offsets = [0, 128], sizes = [8, 128], strides = [1, 1]} : vector<8x384xf32> to vector<8x128xf32>
      %58 = vector.extract_strided_slice %52 {offsets = [0, 256], sizes = [8, 128], strides = [1, 1]} : vector<8x384xf32> to vector<8x128xf32>
      %59 = vector.extract_strided_slice %55 {offsets = [0, 0], sizes = [8, 128], strides = [1, 1]} : vector<8x384xf32> to vector<8x128xf32>
      %60 = vector.extract_strided_slice %55 {offsets = [0, 128], sizes = [8, 128], strides = [1, 1]} : vector<8x384xf32> to vector<8x128xf32>
      %61 = vector.extract_strided_slice %55 {offsets = [0, 256], sizes = [8, 128], strides = [1, 1]} : vector<8x384xf32> to vector<8x128xf32>
      %62 = arith.addf %56, %59 : vector<8x128xf32>
      %63 = arith.negf %62 : vector<8x128xf32>
      %64 = math.exp %63 : vector<8x128xf32>
      %cst_19 = arith.constant 1.000000e+00 : f32
      %65 = vector.broadcast %cst_19 : f32 to vector<8x128xf32>
      %66 = arith.addf %65, %64 : vector<8x128xf32>
      %67 = arith.divf %65, %66 : vector<8x128xf32>
      %68 = arith.addf %57, %60 : vector<8x128xf32>
      %69 = arith.negf %68 : vector<8x128xf32>
      %70 = math.exp %69 : vector<8x128xf32>
      %cst_20 = arith.constant 1.000000e+00 : f32
      %71 = vector.broadcast %cst_20 : f32 to vector<8x128xf32>
      %72 = arith.addf %71, %70 : vector<8x128xf32>
      %73 = arith.divf %71, %72 : vector<8x128xf32>
      %74 = arith.mulf %67, %61 : vector<8x128xf32>
      %75 = arith.addf %58, %74 : vector<8x128xf32>
      %76 = math.tanh %75 : vector<8x128xf32>
      %cst_21 = arith.constant 1.000000e+00 : f32
      %77 = vector.broadcast %cst_21 : f32 to vector<8x128xf32>
      %78 = arith.subf %77, %73 : vector<8x128xf32>
      %79 = arith.mulf %78, %76 : vector<8x128xf32>
      %80 = arith.mulf %73, %49 : vector<8x128xf32>
      %81 = arith.addf %79, %80 : vector<8x128xf32>
      %82 = arith.addi %3, %c1_i32 : i32
      %83 = vector.broadcast %82 : i32 to vector<8x1xi32>
      %84 = arith.cmpi slt, %83, %8 : vector<8x1xi32>
      %85 = vector.shape_cast %84 : vector<8x1xi1> to vector<8x1xi1>
      %86 = vector.broadcast %85 : vector<8x1xi1> to vector<8x128xi1>
      %87 = arith.select %86, %81, %49 : vector<8x128xi1>, vector<8x128xf32>
      %c2_i32 = arith.constant 2 : i32
      %88 = arith.index_cast %c2_i32 : i32 to index
      %c0_22 = arith.constant 0 : index
      %c0_23 = arith.constant 0 : index
      %89 = vector.load %arg3[%88, %c0_22, %c0_23] : memref<8x8x384xf32, #tpu.memory_space<vmem>>, vector<1x8x384xf32>
      %90 = vector.shape_cast %89 : vector<1x8x384xf32> to vector<8x384xf32>
      %cst_24 = arith.constant dense<0.000000e+00> : vector<8x384xf32>
      %91 = tpu.matmul %87, %9, %cst_24 {dimension_numbers = #tpu.dot_dimension_numbers<[1], [0], [0], [1], [0, 0, 1, 1], [], []>} : vector<8x128xf32>, vector<128x384xf32>, vector<8x384xf32> -> vector<8x384xf32>
      %92 = vector.broadcast %10 : vector<1x384xf32> to vector<8x384xf32>
      %93 = arith.addf %91, %92 : vector<8x384xf32>
      %94 = vector.extract_strided_slice %90 {offsets = [0, 0], sizes = [8, 128], strides = [1, 1]} : vector<8x384xf32> to vector<8x128xf32>
      %95 = vector.extract_strided_slice %90 {offsets = [0, 128], sizes = [8, 128], strides = [1, 1]} : vector<8x384xf32> to vector<8x128xf32>
      %96 = vector.extract_strided_slice %90 {offsets = [0, 256], sizes = [8, 128], strides = [1, 1]} : vector<8x384xf32> to vector<8x128xf32>
      %97 = vector.extract_strided_slice %93 {offsets = [0, 0], sizes = [8, 128], strides = [1, 1]} : vector<8x384xf32> to vector<8x128xf32>
      %98 = vector.extract_strided_slice %93 {offsets = [0, 128], sizes = [8, 128], strides = [1, 1]} : vector<8x384xf32> to vector<8x128xf32>
      %99 = vector.extract_strided_slice %93 {offsets = [0, 256], sizes = [8, 128], strides = [1, 1]} : vector<8x384xf32> to vector<8x128xf32>
      %100 = arith.addf %94, %97 : vector<8x128xf32>
      %101 = arith.negf %100 : vector<8x128xf32>
      %102 = math.exp %101 : vector<8x128xf32>
      %cst_25 = arith.constant 1.000000e+00 : f32
      %103 = vector.broadcast %cst_25 : f32 to vector<8x128xf32>
      %104 = arith.addf %103, %102 : vector<8x128xf32>
      %105 = arith.divf %103, %104 : vector<8x128xf32>
      %106 = arith.addf %95, %98 : vector<8x128xf32>
      %107 = arith.negf %106 : vector<8x128xf32>
      %108 = math.exp %107 : vector<8x128xf32>
      %cst_26 = arith.constant 1.000000e+00 : f32
      %109 = vector.broadcast %cst_26 : f32 to vector<8x128xf32>
      %110 = arith.addf %109, %108 : vector<8x128xf32>
      %111 = arith.divf %109, %110 : vector<8x128xf32>
      %112 = arith.mulf %105, %99 : vector<8x128xf32>
      %113 = arith.addf %96, %112 : vector<8x128xf32>
      %114 = math.tanh %113 : vector<8x128xf32>
      %cst_27 = arith.constant 1.000000e+00 : f32
      %115 = vector.broadcast %cst_27 : f32 to vector<8x128xf32>
      %116 = arith.subf %115, %111 : vector<8x128xf32>
      %117 = arith.mulf %116, %114 : vector<8x128xf32>
      %118 = arith.mulf %111, %87 : vector<8x128xf32>
      %119 = arith.addf %117, %118 : vector<8x128xf32>
      %120 = arith.addi %3, %c2_i32 : i32
      %121 = vector.broadcast %120 : i32 to vector<8x1xi32>
      %122 = arith.cmpi slt, %121, %8 : vector<8x1xi32>
      %123 = vector.shape_cast %122 : vector<8x1xi1> to vector<8x1xi1>
      %124 = vector.broadcast %123 : vector<8x1xi1> to vector<8x128xi1>
      %125 = arith.select %124, %119, %87 : vector<8x128xi1>, vector<8x128xf32>
      %c3_i32 = arith.constant 3 : i32
      %126 = arith.index_cast %c3_i32 : i32 to index
      %c0_28 = arith.constant 0 : index
      %c0_29 = arith.constant 0 : index
      %127 = vector.load %arg3[%126, %c0_28, %c0_29] : memref<8x8x384xf32, #tpu.memory_space<vmem>>, vector<1x8x384xf32>
      %128 = vector.shape_cast %127 : vector<1x8x384xf32> to vector<8x384xf32>
      %cst_30 = arith.constant dense<0.000000e+00> : vector<8x384xf32>
      %129 = tpu.matmul %125, %9, %cst_30 {dimension_numbers = #tpu.dot_dimension_numbers<[1], [0], [0], [1], [0, 0, 1, 1], [], []>} : vector<8x128xf32>, vector<128x384xf32>, vector<8x384xf32> -> vector<8x384xf32>
      %130 = vector.broadcast %10 : vector<1x384xf32> to vector<8x384xf32>
      %131 = arith.addf %129, %130 : vector<8x384xf32>
      %132 = vector.extract_strided_slice %128 {offsets = [0, 0], sizes = [8, 128], strides = [1, 1]} : vector<8x384xf32> to vector<8x128xf32>
      %133 = vector.extract_strided_slice %128 {offsets = [0, 128], sizes = [8, 128], strides = [1, 1]} : vector<8x384xf32> to vector<8x128xf32>
      %134 = vector.extract_strided_slice %128 {offsets = [0, 256], sizes = [8, 128], strides = [1, 1]} : vector<8x384xf32> to vector<8x128xf32>
      %135 = vector.extract_strided_slice %131 {offsets = [0, 0], sizes = [8, 128], strides = [1, 1]} : vector<8x384xf32> to vector<8x128xf32>
      %136 = vector.extract_strided_slice %131 {offsets = [0, 128], sizes = [8, 128], strides = [1, 1]} : vector<8x384xf32> to vector<8x128xf32>
      %137 = vector.extract_strided_slice %131 {offsets = [0, 256], sizes = [8, 128], strides = [1, 1]} : vector<8x384xf32> to vector<8x128xf32>
      %138 = arith.addf %132, %135 : vector<8x128xf32>
      %139 = arith.negf %138 : vector<8x128xf32>
      %140 = math.exp %139 : vector<8x128xf32>
      %cst_31 = arith.constant 1.000000e+00 : f32
      %141 = vector.broadcast %cst_31 : f32 to vector<8x128xf32>
      %142 = arith.addf %141, %140 : vector<8x128xf32>
      %143 = arith.divf %141, %142 : vector<8x128xf32>
      %144 = arith.addf %133, %136 : vector<8x128xf32>
      %145 = arith.negf %144 : vector<8x128xf32>
      %146 = math.exp %145 : vector<8x128xf32>
      %cst_32 = arith.constant 1.000000e+00 : f32
      %147 = vector.broadcast %cst_32 : f32 to vector<8x128xf32>
      %148 = arith.addf %147, %146 : vector<8x128xf32>
      %149 = arith.divf %147, %148 : vector<8x128xf32>
      %150 = arith.mulf %143, %137 : vector<8x128xf32>
      %151 = arith.addf %134, %150 : vector<8x128xf32>
      %152 = math.tanh %151 : vector<8x128xf32>
      %cst_33 = arith.constant 1.000000e+00 : f32
      %153 = vector.broadcast %cst_33 : f32 to vector<8x128xf32>
      %154 = arith.subf %153, %149 : vector<8x128xf32>
      %155 = arith.mulf %154, %152 : vector<8x128xf32>
      %156 = arith.mulf %149, %125 : vector<8x128xf32>
      %157 = arith.addf %155, %156 : vector<8x128xf32>
      %158 = arith.addi %3, %c3_i32 : i32
      %159 = vector.broadcast %158 : i32 to vector<8x1xi32>
      %160 = arith.cmpi slt, %159, %8 : vector<8x1xi32>
      %161 = vector.shape_cast %160 : vector<8x1xi1> to vector<8x1xi1>
      %162 = vector.broadcast %161 : vector<8x1xi1> to vector<8x128xi1>
      %163 = arith.select %162, %157, %125 : vector<8x128xi1>, vector<8x128xf32>
      %c4_i32 = arith.constant 4 : i32
      %164 = arith.index_cast %c4_i32 : i32 to index
      %c0_34 = arith.constant 0 : index
      %c0_35 = arith.constant 0 : index
      %165 = vector.load %arg3[%164, %c0_34, %c0_35] : memref<8x8x384xf32, #tpu.memory_space<vmem>>, vector<1x8x384xf32>
      %166 = vector.shape_cast %165 : vector<1x8x384xf32> to vector<8x384xf32>
      %cst_36 = arith.constant dense<0.000000e+00> : vector<8x384xf32>
      %167 = tpu.matmul %163, %9, %cst_36 {dimension_numbers = #tpu.dot_dimension_numbers<[1], [0], [0], [1], [0, 0, 1, 1], [], []>} : vector<8x128xf32>, vector<128x384xf32>, vector<8x384xf32> -> vector<8x384xf32>
      %168 = vector.broadcast %10 : vector<1x384xf32> to vector<8x384xf32>
      %169 = arith.addf %167, %168 : vector<8x384xf32>
      %170 = vector.extract_strided_slice %166 {offsets = [0, 0], sizes = [8, 128], strides = [1, 1]} : vector<8x384xf32> to vector<8x128xf32>
      %171 = vector.extract_strided_slice %166 {offsets = [0, 128], sizes = [8, 128], strides = [1, 1]} : vector<8x384xf32> to vector<8x128xf32>
      %172 = vector.extract_strided_slice %166 {offsets = [0, 256], sizes = [8, 128], strides = [1, 1]} : vector<8x384xf32> to vector<8x128xf32>
      %173 = vector.extract_strided_slice %169 {offsets = [0, 0], sizes = [8, 128], strides = [1, 1]} : vector<8x384xf32> to vector<8x128xf32>
      %174 = vector.extract_strided_slice %169 {offsets = [0, 128], sizes = [8, 128], strides = [1, 1]} : vector<8x384xf32> to vector<8x128xf32>
      %175 = vector.extract_strided_slice %169 {offsets = [0, 256], sizes = [8, 128], strides = [1, 1]} : vector<8x384xf32> to vector<8x128xf32>
      %176 = arith.addf %170, %173 : vector<8x128xf32>
      %177 = arith.negf %176 : vector<8x128xf32>
      %178 = math.exp %177 : vector<8x128xf32>
      %cst_37 = arith.constant 1.000000e+00 : f32
      %179 = vector.broadcast %cst_37 : f32 to vector<8x128xf32>
      %180 = arith.addf %179, %178 : vector<8x128xf32>
      %181 = arith.divf %179, %180 : vector<8x128xf32>
      %182 = arith.addf %171, %174 : vector<8x128xf32>
      %183 = arith.negf %182 : vector<8x128xf32>
      %184 = math.exp %183 : vector<8x128xf32>
      %cst_38 = arith.constant 1.000000e+00 : f32
      %185 = vector.broadcast %cst_38 : f32 to vector<8x128xf32>
      %186 = arith.addf %185, %184 : vector<8x128xf32>
      %187 = arith.divf %185, %186 : vector<8x128xf32>
      %188 = arith.mulf %181, %175 : vector<8x128xf32>
      %189 = arith.addf %172, %188 : vector<8x128xf32>
      %190 = math.tanh %189 : vector<8x128xf32>
      %cst_39 = arith.constant 1.000000e+00 : f32
      %191 = vector.broadcast %cst_39 : f32 to vector<8x128xf32>
      %192 = arith.subf %191, %187 : vector<8x128xf32>
      %193 = arith.mulf %192, %190 : vector<8x128xf32>
      %194 = arith.mulf %187, %163 : vector<8x128xf32>
      %195 = arith.addf %193, %194 : vector<8x128xf32>
      %196 = arith.addi %3, %c4_i32 : i32
      %197 = vector.broadcast %196 : i32 to vector<8x1xi32>
      %198 = arith.cmpi slt, %197, %8 : vector<8x1xi32>
      %199 = vector.shape_cast %198 : vector<8x1xi1> to vector<8x1xi1>
      %200 = vector.broadcast %199 : vector<8x1xi1> to vector<8x128xi1>
      %201 = arith.select %200, %195, %163 : vector<8x128xi1>, vector<8x128xf32>
      %c5_i32 = arith.constant 5 : i32
      %202 = arith.index_cast %c5_i32 : i32 to index
      %c0_40 = arith.constant 0 : index
      %c0_41 = arith.constant 0 : index
      %203 = vector.load %arg3[%202, %c0_40, %c0_41] : memref<8x8x384xf32, #tpu.memory_space<vmem>>, vector<1x8x384xf32>
      %204 = vector.shape_cast %203 : vector<1x8x384xf32> to vector<8x384xf32>
      %cst_42 = arith.constant dense<0.000000e+00> : vector<8x384xf32>
      %205 = tpu.matmul %201, %9, %cst_42 {dimension_numbers = #tpu.dot_dimension_numbers<[1], [0], [0], [1], [0, 0, 1, 1], [], []>} : vector<8x128xf32>, vector<128x384xf32>, vector<8x384xf32> -> vector<8x384xf32>
      %206 = vector.broadcast %10 : vector<1x384xf32> to vector<8x384xf32>
      %207 = arith.addf %205, %206 : vector<8x384xf32>
      %208 = vector.extract_strided_slice %204 {offsets = [0, 0], sizes = [8, 128], strides = [1, 1]} : vector<8x384xf32> to vector<8x128xf32>
      %209 = vector.extract_strided_slice %204 {offsets = [0, 128], sizes = [8, 128], strides = [1, 1]} : vector<8x384xf32> to vector<8x128xf32>
      %210 = vector.extract_strided_slice %204 {offsets = [0, 256], sizes = [8, 128], strides = [1, 1]} : vector<8x384xf32> to vector<8x128xf32>
      %211 = vector.extract_strided_slice %207 {offsets = [0, 0], sizes = [8, 128], strides = [1, 1]} : vector<8x384xf32> to vector<8x128xf32>
      %212 = vector.extract_strided_slice %207 {offsets = [0, 128], sizes = [8, 128], strides = [1, 1]} : vector<8x384xf32> to vector<8x128xf32>
      %213 = vector.extract_strided_slice %207 {offsets = [0, 256], sizes = [8, 128], strides = [1, 1]} : vector<8x384xf32> to vector<8x128xf32>
      %214 = arith.addf %208, %211 : vector<8x128xf32>
      %215 = arith.negf %214 : vector<8x128xf32>
      %216 = math.exp %215 : vector<8x128xf32>
      %cst_43 = arith.constant 1.000000e+00 : f32
      %217 = vector.broadcast %cst_43 : f32 to vector<8x128xf32>
      %218 = arith.addf %217, %216 : vector<8x128xf32>
      %219 = arith.divf %217, %218 : vector<8x128xf32>
      %220 = arith.addf %209, %212 : vector<8x128xf32>
      %221 = arith.negf %220 : vector<8x128xf32>
      %222 = math.exp %221 : vector<8x128xf32>
      %cst_44 = arith.constant 1.000000e+00 : f32
      %223 = vector.broadcast %cst_44 : f32 to vector<8x128xf32>
      %224 = arith.addf %223, %222 : vector<8x128xf32>
      %225 = arith.divf %223, %224 : vector<8x128xf32>
      %226 = arith.mulf %219, %213 : vector<8x128xf32>
      %227 = arith.addf %210, %226 : vector<8x128xf32>
      %228 = math.tanh %227 : vector<8x128xf32>
      %cst_45 = arith.constant 1.000000e+00 : f32
      %229 = vector.broadcast %cst_45 : f32 to vector<8x128xf32>
      %230 = arith.subf %229, %225 : vector<8x128xf32>
      %231 = arith.mulf %230, %228 : vector<8x128xf32>
      %232 = arith.mulf %225, %201 : vector<8x128xf32>
      %233 = arith.addf %231, %232 : vector<8x128xf32>
      %234 = arith.addi %3, %c5_i32 : i32
      %235 = vector.broadcast %234 : i32 to vector<8x1xi32>
      %236 = arith.cmpi slt, %235, %8 : vector<8x1xi32>
      %237 = vector.shape_cast %236 : vector<8x1xi1> to vector<8x1xi1>
      %238 = vector.broadcast %237 : vector<8x1xi1> to vector<8x128xi1>
      %239 = arith.select %238, %233, %201 : vector<8x128xi1>, vector<8x128xf32>
      %c6_i32 = arith.constant 6 : i32
      %240 = arith.index_cast %c6_i32 : i32 to index
      %c0_46 = arith.constant 0 : index
      %c0_47 = arith.constant 0 : index
      %241 = vector.load %arg3[%240, %c0_46, %c0_47] : memref<8x8x384xf32, #tpu.memory_space<vmem>>, vector<1x8x384xf32>
      %242 = vector.shape_cast %241 : vector<1x8x384xf32> to vector<8x384xf32>
      %cst_48 = arith.constant dense<0.000000e+00> : vector<8x384xf32>
      %243 = tpu.matmul %239, %9, %cst_48 {dimension_numbers = #tpu.dot_dimension_numbers<[1], [0], [0], [1], [0, 0, 1, 1], [], []>} : vector<8x128xf32>, vector<128x384xf32>, vector<8x384xf32> -> vector<8x384xf32>
      %244 = vector.broadcast %10 : vector<1x384xf32> to vector<8x384xf32>
      %245 = arith.addf %243, %244 : vector<8x384xf32>
      %246 = vector.extract_strided_slice %242 {offsets = [0, 0], sizes = [8, 128], strides = [1, 1]} : vector<8x384xf32> to vector<8x128xf32>
      %247 = vector.extract_strided_slice %242 {offsets = [0, 128], sizes = [8, 128], strides = [1, 1]} : vector<8x384xf32> to vector<8x128xf32>
      %248 = vector.extract_strided_slice %242 {offsets = [0, 256], sizes = [8, 128], strides = [1, 1]} : vector<8x384xf32> to vector<8x128xf32>
      %249 = vector.extract_strided_slice %245 {offsets = [0, 0], sizes = [8, 128], strides = [1, 1]} : vector<8x384xf32> to vector<8x128xf32>
      %250 = vector.extract_strided_slice %245 {offsets = [0, 128], sizes = [8, 128], strides = [1, 1]} : vector<8x384xf32> to vector<8x128xf32>
      %251 = vector.extract_strided_slice %245 {offsets = [0, 256], sizes = [8, 128], strides = [1, 1]} : vector<8x384xf32> to vector<8x128xf32>
      %252 = arith.addf %246, %249 : vector<8x128xf32>
      %253 = arith.negf %252 : vector<8x128xf32>
      %254 = math.exp %253 : vector<8x128xf32>
      %cst_49 = arith.constant 1.000000e+00 : f32
      %255 = vector.broadcast %cst_49 : f32 to vector<8x128xf32>
      %256 = arith.addf %255, %254 : vector<8x128xf32>
      %257 = arith.divf %255, %256 : vector<8x128xf32>
      %258 = arith.addf %247, %250 : vector<8x128xf32>
      %259 = arith.negf %258 : vector<8x128xf32>
      %260 = math.exp %259 : vector<8x128xf32>
      %cst_50 = arith.constant 1.000000e+00 : f32
      %261 = vector.broadcast %cst_50 : f32 to vector<8x128xf32>
      %262 = arith.addf %261, %260 : vector<8x128xf32>
      %263 = arith.divf %261, %262 : vector<8x128xf32>
      %264 = arith.mulf %257, %251 : vector<8x128xf32>
      %265 = arith.addf %248, %264 : vector<8x128xf32>
      %266 = math.tanh %265 : vector<8x128xf32>
      %cst_51 = arith.constant 1.000000e+00 : f32
      %267 = vector.broadcast %cst_51 : f32 to vector<8x128xf32>
      %268 = arith.subf %267, %263 : vector<8x128xf32>
      %269 = arith.mulf %268, %266 : vector<8x128xf32>
      %270 = arith.mulf %263, %239 : vector<8x128xf32>
      %271 = arith.addf %269, %270 : vector<8x128xf32>
      %272 = arith.addi %3, %c6_i32 : i32
      %273 = vector.broadcast %272 : i32 to vector<8x1xi32>
      %274 = arith.cmpi slt, %273, %8 : vector<8x1xi32>
      %275 = vector.shape_cast %274 : vector<8x1xi1> to vector<8x1xi1>
      %276 = vector.broadcast %275 : vector<8x1xi1> to vector<8x128xi1>
      %277 = arith.select %276, %271, %239 : vector<8x128xi1>, vector<8x128xf32>
      %c7_i32 = arith.constant 7 : i32
      %278 = arith.index_cast %c7_i32 : i32 to index
      %c0_52 = arith.constant 0 : index
      %c0_53 = arith.constant 0 : index
      %279 = vector.load %arg3[%278, %c0_52, %c0_53] : memref<8x8x384xf32, #tpu.memory_space<vmem>>, vector<1x8x384xf32>
      %280 = vector.shape_cast %279 : vector<1x8x384xf32> to vector<8x384xf32>
      %cst_54 = arith.constant dense<0.000000e+00> : vector<8x384xf32>
      %281 = tpu.matmul %277, %9, %cst_54 {dimension_numbers = #tpu.dot_dimension_numbers<[1], [0], [0], [1], [0, 0, 1, 1], [], []>} : vector<8x128xf32>, vector<128x384xf32>, vector<8x384xf32> -> vector<8x384xf32>
      %282 = vector.broadcast %10 : vector<1x384xf32> to vector<8x384xf32>
      %283 = arith.addf %281, %282 : vector<8x384xf32>
      %284 = vector.extract_strided_slice %280 {offsets = [0, 0], sizes = [8, 128], strides = [1, 1]} : vector<8x384xf32> to vector<8x128xf32>
      %285 = vector.extract_strided_slice %280 {offsets = [0, 128], sizes = [8, 128], strides = [1, 1]} : vector<8x384xf32> to vector<8x128xf32>
      %286 = vector.extract_strided_slice %280 {offsets = [0, 256], sizes = [8, 128], strides = [1, 1]} : vector<8x384xf32> to vector<8x128xf32>
      %287 = vector.extract_strided_slice %283 {offsets = [0, 0], sizes = [8, 128], strides = [1, 1]} : vector<8x384xf32> to vector<8x128xf32>
      %288 = vector.extract_strided_slice %283 {offsets = [0, 128], sizes = [8, 128], strides = [1, 1]} : vector<8x384xf32> to vector<8x128xf32>
      %289 = vector.extract_strided_slice %283 {offsets = [0, 256], sizes = [8, 128], strides = [1, 1]} : vector<8x384xf32> to vector<8x128xf32>
      %290 = arith.addf %284, %287 : vector<8x128xf32>
      %291 = arith.negf %290 : vector<8x128xf32>
      %292 = math.exp %291 : vector<8x128xf32>
      %cst_55 = arith.constant 1.000000e+00 : f32
      %293 = vector.broadcast %cst_55 : f32 to vector<8x128xf32>
      %294 = arith.addf %293, %292 : vector<8x128xf32>
      %295 = arith.divf %293, %294 : vector<8x128xf32>
      %296 = arith.addf %285, %288 : vector<8x128xf32>
      %297 = arith.negf %296 : vector<8x128xf32>
      %298 = math.exp %297 : vector<8x128xf32>
      %cst_56 = arith.constant 1.000000e+00 : f32
      %299 = vector.broadcast %cst_56 : f32 to vector<8x128xf32>
      %300 = arith.addf %299, %298 : vector<8x128xf32>
      %301 = arith.divf %299, %300 : vector<8x128xf32>
      %302 = arith.mulf %295, %289 : vector<8x128xf32>
      %303 = arith.addf %286, %302 : vector<8x128xf32>
      %304 = math.tanh %303 : vector<8x128xf32>
      %cst_57 = arith.constant 1.000000e+00 : f32
      %305 = vector.broadcast %cst_57 : f32 to vector<8x128xf32>
      %306 = arith.subf %305, %301 : vector<8x128xf32>
      %307 = arith.mulf %306, %304 : vector<8x128xf32>
      %308 = arith.mulf %301, %277 : vector<8x128xf32>
      %309 = arith.addf %307, %308 : vector<8x128xf32>
      %310 = arith.addi %3, %c7_i32 : i32
      %311 = vector.broadcast %310 : i32 to vector<8x1xi32>
      %312 = arith.cmpi slt, %311, %8 : vector<8x1xi32>
      %313 = vector.shape_cast %312 : vector<8x1xi1> to vector<8x1xi1>
      %314 = vector.broadcast %313 : vector<8x1xi1> to vector<8x128xi1>
      %315 = arith.select %314, %309, %277 : vector<8x128xi1>, vector<8x128xf32>
      %c8_i32_58 = arith.constant 8 : i32
      %c0_59 = arith.constant 0 : index
      %c0_60 = arith.constant 0 : index
      %316 = vector.load %arg7[%c0_59, %c0_60] : memref<8x128xf32, #tpu.memory_space<vmem>>, vector<8x128xf32>
      tpu.vector_store %arg7[%c0_59, %c0_60], %315 {strides = array<i32>} : memref<8x128xf32, #tpu.memory_space<vmem>>, vector<8x128xf32>,
    } else {
    }
    return
  }
  func.func @transform_0(%arg0: i32, %arg1: i32, %arg2: memref<1xi32, #tpu.memory_space<smem>>) -> (i32, i32, i32) {
    %c0_i32 = arith.constant 0 : i32
    %c0_i32_0 = arith.constant 0 : i32
    return %arg1, %arg0, %c0_i32 : i32, i32, i32
  }
  func.func @transform_1(%arg0: i32, %arg1: i32, %arg2: memref<1xi32, #tpu.memory_space<smem>>) -> (i32, i32) {
    %c0_i32 = arith.constant 0 : i32
    %c0_i32_0 = arith.constant 0 : i32
    %c0_i32_1 = arith.constant 0 : i32
    return %c0_i32, %c0_i32_0 : i32, i32
  }
  func.func @transform_2(%arg0: i32, %arg1: i32, %arg2: memref<1xi32, #tpu.memory_space<smem>>) -> (i32, i32) {
    %c0_i32 = arith.constant 0 : i32
    %c0_i32_0 = arith.constant 0 : i32
    %c0_i32_1 = arith.constant 0 : i32
    return %c0_i32, %c0_i32_0 : i32, i32
  }
  func.func @transform_3(%arg0: i32, %arg1: i32, %arg2: memref<1xi32, #tpu.memory_space<smem>>) -> (i32, i32) {
    %c0_i32 = arith.constant 0 : i32
    %c0_i32_0 = arith.constant 0 : i32
    return %arg0, %c0_i32 : i32, i32
  }
  func.func @transform_4(%arg0: i32, %arg1: i32, %arg2: memref<1xi32, #tpu.memory_space<smem>>) -> (i32, i32) {
    %c0_i32 = arith.constant 0 : i32
    %c0_i32_0 = arith.constant 0 : i32
    return %arg0, %c0_i32 : i32, i32
  }
}

</mosaic_0001>

<llo_original>
// kernel: g2p_encoder_forward.1
$region0: #{g2p_encoder_forward.1}
  #allocation0 [shape = 'u32[]', space=smem, size = 0x4, offset = 0x4, fixed_abs, tag = 'smem constant byte address 0x4 - core index']
  #allocation1 [shape = 'u32[144,128]{1,0:T(1,128)}', space=vmem, size = 0x12000, scoped, tag = 'internal scratch']
  #allocation2 [shape = 's32[1]{0}', space=sflag, size = 0x4, scoped, tag = 'scoped memory for g2p_encoder_forward.1']
  #allocation3 [shape = 's32[1]{0:T(128)S(6)}', space=smem, size = 0x200, scoped, tag = 'prefetched SMEM operand 0']
  %s0 = inlined_call_operand.<no memory space> [shape: s32[1], index: 0, kind: input, shape index: {}]
  %s1 = inlined_call_operand.vmem [shape: f32[8,8,384], index: 1, kind: input, shape index: {}]
  %s2 = inlined_call_operand.vmem [shape: f32[128,384], index: 2, kind: input, shape index: {}]
  %s3 = inlined_call_operand.vmem [shape: f32[1,384], index: 3, kind: input, shape index: {}]
  %s4 = inlined_call_operand.vmem [shape: s32[8,1], index: 4, kind: input, shape index: {}]
  %s5 = inlined_call_operand.hbm [shape: f32[8,128], index: 5, kind: output, shape index: {}]
  %s6 = sld [smem:[#allocation0]]
  $region34: #{g2p_encoder_forward.1} parent=0
    _
  %s8 = ssub.s32 1, %s6
  %s9 = scalar_select 0, %s8, %s6
  %10 = sst [smem:[#allocation3]] %s0
  $region1: #{g2p_encoder_forward.1} parent=0
    #allocation4 [shape = 'u8[4096]{0}', space=vmem, size = 0x1000, scoped, tag = 'output window, operand 0, single buffered']
    #allocation5 [shape = 's32[1]{0}', space=sflag, size = 0x4, scoped, tag = 'scoped memory for g2p_encoder_forward.1']
    %11 = vsyncpa [#allocation5], 0
    // Predicated region
    $region2: #{g2p_encoder_forward.1} parent=1 // pred_check
      _
    $region3: #{g2p_encoder_forward.1} parent=1 // pred_check_branch
      %13 = sbr.rel (0) target = $region5
    $region4: #{g2p_encoder_forward.1} parent=1 // pred_region
      _
    $region5: #{g2p_encoder_forward.1} parent=1 // pred_fallthru
      _
    // Predicated region
    $region6: #{g2p_encoder_forward.1} parent=1 // pred_check
      _
    $region7: #{g2p_encoder_forward.1} parent=1 // pred_check_branch
      %15 = sbr.rel (0) target = $region9
    $region8: #{g2p_encoder_forward.1} parent=1 // pred_region
      _
    $region9: #{g2p_encoder_forward.1} parent=1 // pred_fallthru
      _
    // Predicated region
    $region10: #{g2p_encoder_forward.1} parent=1 // pred_check
      _
    $region11: #{g2p_encoder_forward.1} parent=1 // pred_check_branch
      %17 = sbr.rel (0) target = $region13
    $region12: #{g2p_encoder_forward.1} parent=1 // pred_region
      _
    $region13: #{g2p_encoder_forward.1} parent=1 // pred_fallthru
      _
    // Predicated region
    $region14: #{g2p_encoder_forward.1} parent=1 // pred_check
      _
    $region15: #{g2p_encoder_forward.1} parent=1 // pred_check_branch
      %19 = sbr.rel (0) target = $region17
    $region16: #{g2p_encoder_forward.1} parent=1 // pred_region
      _
    $region17: #{g2p_encoder_forward.1} parent=1 // pred_fallthru
      _
    %p20 = scmp.eq.s32.totalorder 0, 0
    // Predicated region
    $region18: #{g2p_encoder_forward.1} parent=1 // pred_check
      %p21 = pneg %p20
    $region19: #{g2p_encoder_forward.1} parent=1 // pred_check_branch
      %23 = sbr.rel (%p21) target = $region21
    $region20: #{g2p_encoder_forward.1} parent=1 // pred_region
      %24 = vst [vmem:[#allocation4] sm:$0xff] 0.0
    $region21: #{g2p_encoder_forward.1} parent=1 // pred_fallthru
      _
    %s25 = smul.u32 0, 8
    %s26 = sld [smem:[#allocation3]]
    %p27 = scmp.lt.s32.totalorder %s25, %s26
    // Predicated region
    $region22: #{g2p_encoder_forward.1} parent=1 // pred_check
      %p28 = pneg %p27
    $region23: #{g2p_encoder_forward.1} parent=1 // pred_check_branch
      %30 = sbr.rel (%p28) target = $region25
    $region24: #{g2p_encoder_forward.1} parent=1 // pred_region
      %v31 = vld [vmem:[%s4] sm:$0xff]
      %v32 = vld [vmem:[%s2] sm:$0xff]
      %v33 = vld [vmem:[%s2 + $0x8] sm:$0xff]
      %v34 = vld [vmem:[%s2 + $0x10] sm:$0xff]
      %v35 = vld [vmem:[%s2 + $0x18] sm:$0xff]
      %v36 = vld [vmem:[%s2 + $0x20] sm:$0xff]
      %v37 = vld [vmem:[%s2 + $0x28] sm:$0xff]
      %v38 = vld [vmem:[%s2 + $0x30] sm:$0xff]
      %v39 = vld [vmem:[%s2 + $0x38] sm:$0xff]
      %v40 = vld [vmem:[%s2 + $0x40] sm:$0xff]
      %v41 = vld [vmem:[%s2 + $0x48] sm:$0xff]
      %v42 = vld [vmem:[%s2 + $0x50] sm:$0xff]
      %v43 = vld [vmem:[%s2 + $0x58] sm:$0xff]
      %v44 = vld [vmem:[%s2 + $0x60] sm:$0xff]
      %v45 = vld [vmem:[%s2 + $0x68] sm:$0xff]
      %v46 = vld [vmem:[%s2 + $0x70] sm:$0xff]
      %v47 = vld [vmem:[%s2 + $0x78] sm:$0xff]
      %v48 = vld [vmem:[%s2 + $0x80] sm:$0xff]
      %v49 = vld [vmem:[%s2 + $0x88] sm:$0xff]
      %v50 = vld [vmem:[%s2 + $0x90] sm:$0xff]
      %v51 = vld [vmem:[%s2 + $0x98] sm:$0xff]
      %v52 = vld [vmem:[%s2 + $0xa0] sm:$0xff]
      %v53 = vld [vmem:[%s2 + $0xa8] sm:$0xff]
      %v54 = vld [vmem:[%s2 + $0xb0] sm:$0xff]
      %v55 = vld [vmem:[%s2 + $0xb8] sm:$0xff]
      %v56 = vld [vmem:[%s2 + $0xc0] sm:$0xff]
      %v57 = vld [vmem:[%s2 + $0xc8] sm:$0xff]
      %v58 = vld [vmem:[%s2 + $0xd0] sm:$0xff]
      %v59 = vld [vmem:[%s2 + $0xd8] sm:$0xff]
      %v60 = vld [vmem:[%s2 + $0xe0] sm:$0xff]
      %v61 = vld [vmem:[%s2 + $0xe8] sm:$0xff]
      %v62 = vld [vmem:[%s2 + $0xf0] sm:$0xff]
      %v63 = vld [vmem:[%s2 + $0xf8] sm:$0xff]
      %v64 = vld [vmem:[%s2 + $0x100] sm:$0xff]
      %v65 = vld [vmem:[%s2 + $0x108] sm:$0xff]
      %v66 = vld [vmem:[%s2 + $0x110] sm:$0xff]
      %v67 = vld [vmem:[%s2 + $0x118] sm:$0xff]
      %v68 = vld [vmem:[%s2 + $0x120] sm:$0xff]
      %v69 = vld [vmem:[%s2 + $0x128] sm:$0xff]
      %v70 = vld [vmem:[%s2 + $0x130] sm:$0xff]
      %v71 = vld [vmem:[%s2 + $0x138] sm:$0xff]
      %v72 = vld [vmem:[%s2 + $0x140] sm:$0xff]
      %v73 = vld [vmem:[%s2 + $0x148] sm:$0xff]
      %v74 = vld [vmem:[%s2 + $0x150] sm:$0xff]
      %v75 = vld [vmem:[%s2 + $0x158] sm:$0xff]
      %v76 = vld [vmem:[%s2 + $0x160] sm:$0xff]
      %v77 = vld [vmem:[%s2 + $0x168] sm:$0xff]
      %v78 = vld [vmem:[%s2 + $0x170] sm:$0xff]
      %v79 = vld [vmem:[%s2 + $0x178] sm:$0xff]
      %v80 = vld [vmem:[%s3] sm:$0x7]
      %v81 = vld [vmem:[#allocation4] sm:$0xff]
      %v82 = vld [vmem:[%s1] sm:$0xff]
      %v83 = vld [vmem:[%s1 + $0x8] sm:$0xff]
      %v84 = vld [vmem:[%s1 + $0x10] sm:$0xff]
      %v86 = vlaneseq
      %v87 = vshrl.u32 %v86, 7
      %v88 = vsub.s32 0, %v87
      %v89 = vrot.slane %v80, %v88
      %v90 = vlaneseq
      %v91 = vshrl.u32 %v90, 7
      %v92 = vsub.s32 1, %v91
      %v93 = vrot.slane %v80, %v92
      %v94 = vlaneseq
      %v95 = vshrl.u32 %v94, 7
      %v96 = vsub.s32 2, %v95
      %v97 = vrot.slane %v80, %v96
      %101 = vmatprep.subr.mxu0 %v33
      %102 = vmatpush1.msra.mxu0 %v32
      %103 = vmatprep.subr.mxu0 %v36
      %104 = vmatpush1.msra.mxu0 %v35
      %105 = vmatprep.subr.mxu0 %v39
      %106 = vmatpush1.msra.mxu0 %v38
      %107 = vmatprep.subr.mxu0 %v42
      %108 = vmatpush1.msra.mxu0 %v41
      %109 = vmatprep.subr.mxu0 %v45
      %110 = vmatpush1.msra.mxu0 %v44
      %111 = vmatprep.subr.mxu0 %v48
      %112 = vmatpush1.msra.mxu0 %v47
      %113 = vmatprep.subr.mxu0 %v51
      %114 = vmatpush1.msra.mxu0 %v50
      %115 = vmatprep.subr.mxu0 %v54
      %116 = vmatpush1.msra.mxu0 %v53
      %117 = vmatprep.subr.mxu0 %v57
      %118 = vmatpush1.msra.mxu0 %v56
      %119 = vmatprep.subr.mxu0 %v60
      %120 = vmatpush1.msra.mxu0 %v59
      %121 = vmatprep.subr.mxu0 %v63
      %122 = vmatpush1.msra.mxu0 %v62
      %123 = vmatprep.subr.mxu0 %v66
      %124 = vmatpush1.msra.mxu0 %v65
      %125 = vmatprep.subr.mxu0 %v69
      %126 = vmatpush1.msra.mxu0 %v68
      %127 = vmatprep.subr.mxu0 %v72
      %128 = vmatpush1.msra.mxu0 %v71
      %129 = vmatprep.subr.mxu0 %v75
      %130 = vmatpush1.msra.mxu0 %v74
      %131 = vmatprep.subr.mxu0 %v78
      %132 = vmatpush1.msra.mxu0 %v77
      %133 = vmatprep.subr.mxu0 0.0
      %134 = vmatpush1.msra.mxu0 0.0
      %135 = vmatprep.subr.mxu0 0.0
      %136 = vmatpush1.msra.mxu0 0.0
      %137 = vmatprep.subr.mxu0 0.0
      %138 = vmatpush1.msra.mxu0 0.0
      %139 = vmatprep.subr.mxu0 0.0
      %140 = vmatpush1.msra.mxu0 0.0
      %141 = vmatprep.subr.mxu0 0.0
      %142 = vmatpush1.msra.mxu0 0.0
      %143 = vmatprep.subr.mxu0 0.0
      %144 = vmatpush1.msra.mxu0 0.0
      %145 = vmatprep.subr.mxu0 0.0
      %146 = vmatpush1.msra.mxu0 0.0
      %147 = vmatprep.subr.mxu0 0.0
      %148 = vmatpush1.msra.mxu0 0.0
      %149 = vmatprep.subr.mxu0 0.0
      %150 = vmatpush1.msra.mxu0 0.0
      %151 = vmatprep.subr.mxu0 0.0
      %152 = vmatpush1.msra.mxu0 0.0
      %153 = vmatprep.subr.mxu0 0.0
      %154 = vmatpush1.msra.mxu0 0.0
      %155 = vmatprep.subr.mxu0 0.0
      %156 = vmatpush1.msra.mxu0 0.0
      %157 = vmatprep.subr.mxu0 0.0
      %158 = vmatpush1.msra.mxu0 0.0
      %159 = vmatprep.subr.mxu0 0.0
      %160 = vmatpush1.msra.mxu0 0.0
      %161 = vmatprep.subr.mxu0 0.0
      %162 = vmatpush1.msra.mxu0 0.0
      %163 = vmatprep.subr.mxu0 0.0
      %164 = vmatpush1.msra.mxu0 0.0
      %165 = vmatprep.mubr.f32.mxu0 0.0
      %166 = vmatmul.mubr.f32.gmra.mrb[0].mxu0 %v81
      %v167 = vpop.f32.mrb[0].mxu0
      %v168 = vadd.f32 %v89, %v167
      %v169 = vpop.f32.mrb[0].mxu0
      %v170 = vadd.f32 %v93, %v169
      %171 = vdwg.mxu0
      %172 = vmatprep.subr.mxu0 0.0
      %173 = vmatpush1.msra.mxu0 %v34
      %174 = vmatprep.subr.mxu0 0.0
      %175 = vmatpush1.msra.mxu0 %v37
      %176 = vmatprep.subr.mxu0 0.0
      %177 = vmatpush1.msra.mxu0 %v40
      %178 = vmatprep.subr.mxu0 0.0
      %179 = vmatpush1.msra.mxu0 %v43
      %180 = vmatprep.subr.mxu0 0.0
      %181 = vmatpush1.msra.mxu0 %v46
      %182 = vmatprep.subr.mxu0 0.0
      %183 = vmatpush1.msra.mxu0 %v49
      %184 = vmatprep.subr.mxu0 0.0
      %185 = vmatpush1.msra.mxu0 %v52
      %186 = vmatprep.subr.mxu0 0.0
      %187 = vmatpush1.msra.mxu0 %v55
      %188 = vmatprep.subr.mxu0 0.0
      %189 = vmatpush1.msra.mxu0 %v58
      %190 = vmatprep.subr.mxu0 0.0
      %191 = vmatpush1.msra.mxu0 %v61
      %192 = vmatprep.subr.mxu0 0.0
      %193 = vmatpush1.msra.mxu0 %v64
      %194 = vmatprep.subr.mxu0 0.0
      %195 = vmatpush1.msra.mxu0 %v67
      %196 = vmatprep.subr.mxu0 0.0
      %197 = vmatpush1.msra.mxu0 %v70
      %198 = vmatprep.subr.mxu0 0.0
      %199 = vmatpush1.msra.mxu0 %v73
      %200 = vmatprep.subr.mxu0 0.0
      %201 = vmatpush1.msra.mxu0 %v76
      %202 = vmatprep.subr.mxu0 0.0
      %203 = vmatpush1.msra.mxu0 %v79
      %204 = vmatprep.subr.mxu0 0.0
      %205 = vmatpush1.msra.mxu0 0.0
      %206 = vmatprep.subr.mxu0 0.0
      %207 = vmatpush1.msra.mxu0 0.0
      %208 = vmatprep.subr.mxu0 0.0
      %209 = vmatpush1.msra.mxu0 0.0
      %210 = vmatprep.subr.mxu0 0.0
      %211 = vmatpush1.msra.mxu0 0.0
      %212 = vmatprep.subr.mxu0 0.0
      %213 = vmatpush1.msra.mxu0 0.0
      %214 = vmatprep.subr.mxu0 0.0
      %215 = vmatpush1.msra.mxu0 0.0
      %216 = vmatprep.subr.mxu0 0.0
      %217 = vmatpush1.msra.mxu0 0.0
      %218 = vmatprep.subr.mxu0 0.0
      %219 = vmatpush1.msra.mxu0 0.0
      %220 = vmatprep.subr.mxu0 0.0
      %221 = vmatpush1.msra.mxu0 0.0
      %222 = vmatprep.subr.mxu0 0.0
      %223 = vmatpush1.msra.mxu0 0.0
      %224 = vmatprep.subr.mxu0 0.0
      %225 = vmatpush1.msra.mxu0 0.0
      %226 = vmatprep.subr.mxu0 0.0
      %227 = vmatpush1.msra.mxu0 0.0
      %228 = vmatprep.subr.mxu0 0.0
      %229 = vmatpush1.msra.mxu0 0.0
      %230 = vmatprep.subr.mxu0 0.0
      %231 = vmatpush1.msra.mxu0 0.0
      %232 = vmatprep.subr.mxu0 0.0
      %233 = vmatpush1.msra.mxu0 0.0
      %234 = vmatprep.subr.mxu0 0.0
      %235 = vmatpush1.msra.mxu0 0.0
      %236 = vmatprep.mubr.f32.mxu0 0.0
      %237 = vmatmul.mubr.f32.gmra.mrb[0].mxu0 %v81
      %v238 = vpop.f32.mrb[0].mxu0
      %v239 = vadd.f32 %v97, %v238
      %v240 = vpop.f32.mrb[0].mxu0
      %241 = vdwg.mxu0
      %v242 = vadd.f32 %v82, %v168
      %v243 = vxor.u32 %v242, 2147483648
      %v244 = vmul.f32 %v243, 1.442695
      %v245 = vpow.pop %v244
      %v246 = vadd.f32 %v245, 1.0
      %v247 = vrcp.pop %v246
      %v248 = vmul.f32 1.0, %v247
      %v249 = vadd.f32 %v83, %v170
      %v250 = vxor.u32 %v249, 2147483648
      %v251 = vmul.f32 %v250, 1.442695
      %v252 = vpow.pop %v251
      %v253 = vadd.f32 %v252, 1.0
      %v254 = vrcp.pop %v253
      %v255 = vmul.f32 1.0, %v254
      %v256 = vmul.f32 %v248, %v239
      %v257 = vadd.f32 %v84, %v256
      %v258 = vtanh.pop %v257
      %v259 = vsub.f32 1.0, %v255
      %v260 = vmul.f32 %v259, %v258
      %v261 = vmul.f32 %v255, %v81
      %v262 = vadd.f32 %v260, %v261
      %v263 = vstv %s25
      %vm264 = vcmp.lt.s32.totalorder %v263, %v31
      %v265 = vsel %vm264, 1, 0
      %266 = vset.pattern.permute.xlu0 0
      %267 = vperm.xlu0 %266, %v265
      %v268 = vpop.permute.xlu0 %267
      %vm269 = vcmp.eq.s32.totalorder %v268, 1
      %v270 = vsel %vm269, %v262, %v81
      %s271 = scalar_lea.vmem %s1, 24
      %v272 = vld [vmem:[%s271] sm:$0xff]
      %v273 = vld [vmem:[%s271 + $0x8] sm:$0xff]
      %v274 = vld [vmem:[%s271 + $0x10] sm:$0xff]
      %275 = vmatprep.subr.mxu0 %v33
      %276 = vmatpush1.msra.mxu0 %v32
      %277 = vmatprep.subr.mxu0 %v36
      %278 = vmatpush1.msra.mxu0 %v35
      %279 = vmatprep.subr.mxu0 %v39
      %280 = vmatpush1.msra.mxu0 %v38
      %281 = vmatprep.subr.mxu0 %v42
      %282 = vmatpush1.msra.mxu0 %v41
      %283 = vmatprep.subr.mxu0 %v45
      %284 = vmatpush1.msra.mxu0 %v44
      %285 = vmatprep.subr.mxu0 %v48
      %286 = vmatpush1.msra.mxu0 %v47
      %287 = vmatprep.subr.mxu0 %v51
      %288 = vmatpush1.msra.mxu0 %v50
      %289 = vmatprep.subr.mxu0 %v54
      %290 = vmatpush1.msra.mxu0 %v53
      %291 = vmatprep.subr.mxu0 %v57
      %292 = vmatpush1.msra.mxu0 %v56
      %293 = vmatprep.subr.mxu0 %v60
      %294 = vmatpush1.msra.mxu0 %v59
      %295 = vmatprep.subr.mxu0 %v63
      %296 = vmatpush1.msra.mxu0 %v62
      %297 = vmatprep.subr.mxu0 %v66
      %298 = vmatpush1.msra.mxu0 %v65
      %299 = vmatprep.subr.mxu0 %v69
      %300 = vmatpush1.msra.mxu0 %v68
      %301 = vmatprep.subr.mxu0 %v72
      %302 = vmatpush1.msra.mxu0 %v71
      %303 = vmatprep.subr.mxu0 %v75
      %304 = vmatpush1.msra.mxu0 %v74
      %305 = vmatprep.subr.mxu0 %v78
      %306 = vmatpush1.msra.mxu0 %v77
      %307 = vmatprep.subr.mxu0 0.0
      %308 = vmatpush1.msra.mxu0 0.0
      %309 = vmatprep.subr.mxu0 0.0
      %310 = vmatpush1.msra.mxu0 0.0
      %311 = vmatprep.subr.mxu0 0.0
      %312 = vmatpush1.msra.mxu0 0.0
      %313 = vmatprep.subr.mxu0 0.0
      %314 = vmatpush1.msra.mxu0 0.0
      %315 = vmatprep.subr.mxu0 0.0
      %316 = vmatpush1.msra.mxu0 0.0
      %317 = vmatprep.subr.mxu0 0.0
      %318 = vmatpush1.msra.mxu0 0.0
      %319 = vmatprep.subr.mxu0 0.0
      %320 = vmatpush1.msra.mxu0 0.0
      %321 = vmatprep.subr.mxu0 0.0
      %322 = vmatpush1.msra.mxu0 0.0
      %323 = vmatprep.subr.mxu0 0.0
      %324 = vmatpush1.msra.mxu0 0.0
      %325 = vmatprep.subr.mxu0 0.0
      %326 = vmatpush1.msra.mxu0 0.0
      %327 = vmatprep.subr.mxu0 0.0
      %328 = vmatpush1.msra.mxu0 0.0
      %329 = vmatprep.subr.mxu0 0.0
      %330 = vmatpush1.msra.mxu0 0.0
      %331 = vmatprep.subr.mxu0 0.0
      %332 = vmatpush1.msra.mxu0 0.0
      %333 = vmatprep.subr.mxu0 0.0
      %334 = vmatpush1.msra.mxu0 0.0
      %335 = vmatprep.subr.mxu0 0.0
      %336 = vmatpush1.msra.mxu0 0.0
      %337 = vmatprep.subr.mxu0 0.0
      %338 = vmatpush1.msra.mxu0 0.0
      %339 = vmatprep.mubr.f32.mxu0 0.0
      %340 = vmatmul.mubr.f32.gmra.mrb[0].mxu0 %v270
      %v341 = vpop.f32.mrb[0].mxu0
      %v342 = vadd.f32 %v89, %v341
      %v343 = vpop.f32.mrb[0].mxu0
      %v344 = vadd.f32 %v93, %v343
      %345 = vdwg.mxu0
      %346 = vmatprep.subr.mxu0 0.0
      %347 = vmatpush1.msra.mxu0 %v34
      %348 = vmatprep.subr.mxu0 0.0
      %349 = vmatpush1.msra.mxu0 %v37
      %350 = vmatprep.subr.mxu0 0.0
      %351 = vmatpush1.msra.mxu0 %v40
      %352 = vmatprep.subr.mxu0 0.0
      %353 = vmatpush1.msra.mxu0 %v43
      %354 = vmatprep.subr.mxu0 0.0
      %355 = vmatpush1.msra.mxu0 %v46
      %356 = vmatprep.subr.mxu0 0.0
      %357 = vmatpush1.msra.mxu0 %v49
      %358 = vmatprep.subr.mxu0 0.0
      %359 = vmatpush1.msra.mxu0 %v52
      %360 = vmatprep.subr.mxu0 0.0
      %361 = vmatpush1.msra.mxu0 %v55
      %362 = vmatprep.subr.mxu0 0.0
      %363 = vmatpush1.msra.mxu0 %v58
      %364 = vmatprep.subr.mxu0 0.0
      %365 = vmatpush1.msra.mxu0 %v61
      %366 = vmatprep.subr.mxu0 0.0
      %367 = vmatpush1.msra.mxu0 %v64
      %368 = vmatprep.subr.mxu0 0.0
      %369 = vmatpush1.msra.mxu0 %v67
      %370 = vmatprep.subr.mxu0 0.0
      %371 = vmatpush1.msra.mxu0 %v70
      %372 = vmatprep.subr.mxu0 0.0
      %373 = vmatpush1.msra.mxu0 %v73
      %374 = vmatprep.subr.mxu0 0.0
      %375 = vmatpush1.msra.mxu0 %v76
      %376 = vmatprep.subr.mxu0 0.0
      %377 = vmatpush1.msra.mxu0 %v79
      %378 = vmatprep.subr.mxu0 0.0
      %379 = vmatpush1.msra.mxu0 0.0
      %380 = vmatprep.subr.mxu0 0.0
      %381 = vmatpush1.msra.mxu0 0.0
      %382 = vmatprep.subr.mxu0 0.0
      %383 = vmatpush1.msra.mxu0 0.0
      %384 = vmatprep.subr.mxu0 0.0
      %385 = vmatpush1.msra.mxu0 0.0
      %386 = vmatprep.subr.mxu0 0.0
      %387 = vmatpush1.msra.mxu0 0.0
      %388 = vmatprep.subr.mxu0 0.0
      %389 = vmatpush1.msra.mxu0 0.0
      %390 = vmatprep.subr.mxu0 0.0
      %391 = vmatpush1.msra.mxu0 0.0
      %392 = vmatprep.subr.mxu0 0.0
      %393 = vmatpush1.msra.mxu0 0.0
      %394 = vmatprep.subr.mxu0 0.0
      %395 = vmatpush1.msra.mxu0 0.0
      %396 = vmatprep.subr.mxu0 0.0
      %397 = vmatpush1.msra.mxu0 0.0
      %398 = vmatprep.subr.mxu0 0.0
      %399 = vmatpush1.msra.mxu0 0.0
      %400 = vmatprep.subr.mxu0 0.0
      %401 = vmatpush1.msra.mxu0 0.0
      %402 = vmatprep.subr.mxu0 0.0
      %403 = vmatpush1.msra.mxu0 0.0
      %404 = vmatprep.subr.mxu0 0.0
      %405 = vmatpush1.msra.mxu0 0.0
      %406 = vmatprep.subr.mxu0 0.0
      %407 = vmatpush1.msra.mxu0 0.0
      %408 = vmatprep.subr.mxu0 0.0
      %409 = vmatpush1.msra.mxu0 0.0
      %410 = vmatprep.mubr.f32.mxu0 0.0
      %411 = vmatmul.mubr.f32.gmra.mrb[0].mxu0 %v270
      %v412 = vpop.f32.mrb[0].mxu0
      %v413 = vadd.f32 %v97, %v412
      %v414 = vpop.f32.mrb[0].mxu0
      %415 = vdwg.mxu0
      %v416 = vadd.f32 %v272, %v342
      %v417 = vxor.u32 %v416, 2147483648
      %v418 = vmul.f32 %v417, 1.442695
      %v419 = vpow.pop %v418
      %v420 = vadd.f32 %v419, 1.0
      %v421 = vrcp.pop %v420
      %v422 = vmul.f32 1.0, %v421
      %v423 = vadd.f32 %v273, %v344
      %v424 = vxor.u32 %v423, 2147483648
      %v425 = vmul.f32 %v424, 1.442695
      %v426 = vpow.pop %v425
      %v427 = vadd.f32 %v426, 1.0
      %v428 = vrcp.pop %v427
      %v429 = vmul.f32 1.0, %v428
      %v430 = vmul.f32 %v422, %v413
      %v431 = vadd.f32 %v274, %v430
      %v432 = vtanh.pop %v431
      %v433 = vsub.f32 1.0, %v429
      %v434 = vmul.f32 %v433, %v432
      %v435 = vmul.f32 %v429, %v270
      %v436 = vadd.f32 %v434, %v435
      %s437 = sadd.s32 %s25, 1
      %v438 = vstv %s437
      %vm439 = vcmp.lt.s32.totalorder %v438, %v31
      %v440 = vsel %vm439, 1, 0
      %441 = vset.pattern.permute.xlu0 0
      %442 = vperm.xlu0 %441, %v440
      %v443 = vpop.permute.xlu0 %442
      %vm444 = vcmp.eq.s32.totalorder %v443, 1
      %v445 = vsel %vm444, %v436, %v270
      %s446 = scalar_lea.vmem %s1, 48
      %v447 = vld [vmem:[%s446] sm:$0xff]
      %v448 = vld [vmem:[%s446 + $0x8] sm:$0xff]
      %v449 = vld [vmem:[%s446 + $0x10] sm:$0xff]
      %450 = vmatprep.subr.mxu0 %v33
      %451 = vmatpush1.msra.mxu0 %v32
      %452 = vmatprep.subr.mxu0 %v36
      %453 = vmatpush1.msra.mxu0 %v35
      %454 = vmatprep.subr.mxu0 %v39
      %455 = vmatpush1.msra.mxu0 %v38
      %456 = vmatprep.subr.mxu0 %v42
      %457 = vmatpush1.msra.mxu0 %v41
      %458 = vmatprep.subr.mxu0 %v45
      %459 = vmatpush1.msra.mxu0 %v44
      %460 = vmatprep.subr.mxu0 %v48
      %461 = vmatpush1.msra.mxu0 %v47
      %462 = vmatprep.subr.mxu0 %v51
      %463 = vmatpush1.msra.mxu0 %v50
      %464 = vmatprep.subr.mxu0 %v54
      %465 = vmatpush1.msra.mxu0 %v53
      %466 = vmatprep.subr.mxu0 %v57
      %467 = vmatpush1.msra.mxu0 %v56
      %468 = vmatprep.subr.mxu0 %v60
      %469 = vmatpush1.msra.mxu0 %v59
      %470 = vmatprep.subr.mxu0 %v63
      %471 = vmatpush1.msra.mxu0 %v62
      %472 = vmatprep.subr.mxu0 %v66
      %473 = vmatpush1.msra.mxu0 %v65
      %474 = vmatprep.subr.mxu0 %v69
      %475 = vmatpush1.msra.mxu0 %v68
      %476 = vmatprep.subr.mxu0 %v72
      %477 = vmatpush1.msra.mxu0 %v71
      %478 = vmatprep.subr.mxu0 %v75
      %479 = vmatpush1.msra.mxu0 %v74
      %480 = vmatprep.subr.mxu0 %v78
      %481 = vmatpush1.msra.mxu0 %v77
      %482 = vmatprep.subr.mxu0 0.0
      %483 = vmatpush1.msra.mxu0 0.0
      %484 = vmatprep.subr.mxu0 0.0
      %485 = vmatpush1.msra.mxu0 0.0
      %486 = vmatprep.subr.mxu0 0.0
      %487 = vmatpush1.msra.mxu0 0.0
      %488 = vmatprep.subr.mxu0 0.0
      %489 = vmatpush1.msra.mxu0 0.0
      %490 = vmatprep.subr.mxu0 0.0
      %491 = vmatpush1.msra.mxu0 0.0
      %492 = vmatprep.subr.mxu0 0.0
      %493 = vmatpush1.msra.mxu0 0.0
      %494 = vmatprep.subr.mxu0 0.0
      %495 = vmatpush1.msra.mxu0 0.0
      %496 = vmatprep.subr.mxu0 0.0
      %497 = vmatpush1.msra.mxu0 0.0
      %498 = vmatprep.subr.mxu0 0.0
      %499 = vmatpush1.msra.mxu0 0.0
      %500 = vmatprep.subr.mxu0 0.0
      %501 = vmatpush1.msra.mxu0 0.0
      %502 = vmatprep.subr.mxu0 0.0
      %503 = vmatpush1.msra.mxu0 0.0
      %504 = vmatprep.subr.mxu0 0.0
      %505 = vmatpush1.msra.mxu0 0.0
      %506 = vmatprep.subr.mxu0 0.0
      %507 = vmatpush1.msra.mxu0 0.0
      %508 = vmatprep.subr.mxu0 0.0
      %509 = vmatpush1.msra.mxu0 0.0
      %510 = vmatprep.subr.mxu0 0.0
      %511 = vmatpush1.msra.mxu0 0.0
      %512 = vmatprep.subr.mxu0 0.0
      %513 = vmatpush1.msra.mxu0 0.0
      %514 = vmatprep.mubr.f32.mxu0 0.0
      %515 = vmatmul.mubr.f32.gmra.mrb[0].mxu0 %v445
      %v516 = vpop.f32.mrb[0].mxu0
      %v517 = vadd.f32 %v89, %v516
      %v518 = vpop.f32.mrb[0].mxu0
      %v519 = vadd.f32 %v93, %v518
      %520 = vdwg.mxu0
      %521 = vmatprep.subr.mxu0 0.0
      %522 = vmatpush1.msra.mxu0 %v34
      %523 = vmatprep.subr.mxu0 0.0
      %524 = vmatpush1.msra.mxu0 %v37
      %525 = vmatprep.subr.mxu0 0.0
      %526 = vmatpush1.msra.mxu0 %v40
      %527 = vmatprep.subr.mxu0 0.0
      %528 = vmatpush1.msra.mxu0 %v43
      %529 = vmatprep.subr.mxu0 0.0
      %530 = vmatpush1.msra.mxu0 %v46
      %531 = vmatprep.subr.mxu0 0.0
      %532 = vmatpush1.msra.mxu0 %v49
      %533 = vmatprep.subr.mxu0 0.0
      %534 = vmatpush1.msra.mxu0 %v52
      %535 = vmatprep.subr.mxu0 0.0
      %536 = vmatpush1.msra.mxu0 %v55
      %537 = vmatprep.subr.mxu0 0.0
      %538 = vmatpush1.msra.mxu0 %v58
      %539 = vmatprep.subr.mxu0 0.0
      %540 = vmatpush1.msra.mxu0 %v61
      %541 = vmatprep.subr.mxu0 0.0
      %542 = vmatpush1.msra.mxu0 %v64
      %543 = vmatprep.subr.mxu0 0.0
      %544 = vmatpush1.msra.mxu0 %v67
      %545 = vmatprep.subr.mxu0 0.0
      %546 = vmatpush1.msra.mxu0 %v70
      %547 = vmatprep.subr.mxu0 0.0
      %548 = vmatpush1.msra.mxu0 %v73
      %549 = vmatprep.subr.mxu0 0.0
      %550 = vmatpush1.msra.mxu0 %v76
      %551 = vmatprep.subr.mxu0 0.0
      %552 = vmatpush1.msra.mxu0 %v79
      %553 = vmatprep.subr.mxu0 0.0
      %554 = vmatpush1.msra.mxu0 0.0
      %555 = vmatprep.subr.mxu0 0.0
      %556 = vmatpush1.msra.mxu0 0.0
      %557 = vmatprep.subr.mxu0 0.0
      %558 = vmatpush1.msra.mxu0 0.0
      %559 = vmatprep.subr.mxu0 0.0
      %560 = vmatpush1.msra.mxu0 0.0
      %561 = vmatprep.subr.mxu0 0.0
      %562 = vmatpush1.msra.mxu0 0.0
      %563 = vmatprep.subr.mxu0 0.0
      %564 = vmatpush1.msra.mxu0 0.0
      %565 = vmatprep.subr.mxu0 0.0
      %566 = vmatpush1.msra.mxu0 0.0
      %567 = vmatprep.subr.mxu0 0.0
      %568 = vmatpush1.msra.mxu0 0.0
      %569 = vmatprep.subr.mxu0 0.0
      %570 = vmatpush1.msra.mxu0 0.0
      %571 = vmatprep.subr.mxu0 0.0
      %572 = vmatpush1.msra.mxu0 0.0
      %573 = vmatprep.subr.mxu0 0.0
      %574 = vmatpush1.msra.mxu0 0.0
      %575 = vmatprep.subr.mxu0 0.0
      %576 = vmatpush1.msra.mxu0 0.0
      %577 = vmatprep.subr.mxu0 0.0
      %578 = vmatpush1.msra.mxu0 0.0
      %579 = vmatprep.subr.mxu0 0.0
      %580 = vmatpush1.msra.mxu0 0.0
      %581 = vmatprep.subr.mxu0 0.0
      %582 = vmatpush1.msra.mxu0 0.0
      %583 = vmatprep.subr.mxu0 0.0
      %584 = vmatpush1.msra.mxu0 0.0
      %585 = vmatprep.mubr.f32.mxu0 0.0
      %586 = vmatmul.mubr.f32.gmra.mrb[0].mxu0 %v445
      %v587 = vpop.f32.mrb[0].mxu0
      %v588 = vadd.f32 %v97, %v587
      %v589 = vpop.f32.mrb[0].mxu0
      %590 = vdwg.mxu0
      %v591 = vadd.f32 %v447, %v517
      %v592 = vxor.u32 %v591, 2147483648
      %v593 = vmul.f32 %v592, 1.442695
      %v594 = vpow.pop %v593
      %v595 = vadd.f32 %v594, 1.0
      %v596 = vrcp.pop %v595
      %v597 = vmul.f32 1.0, %v596
      %v598 = vadd.f32 %v448, %v519
      %v599 = vxor.u32 %v598, 2147483648
      %v600 = vmul.f32 %v599, 1.442695
      %v601 = vpow.pop %v600
      %v602 = vadd.f32 %v601, 1.0
      %v603 = vrcp.pop %v602
      %v604 = vmul.f32 1.0, %v603
      %v605 = vmul.f32 %v597, %v588
      %v606 = vadd.f32 %v449, %v605
      %v607 = vtanh.pop %v606
      %v608 = vsub.f32 1.0, %v604
      %v609 = vmul.f32 %v608, %v607
      %v610 = vmul.f32 %v604, %v445
      %v611 = vadd.f32 %v609, %v610
      %s612 = sadd.s32 %s25, 2
      %v613 = vstv %s612
      %vm614 = vcmp.lt.s32.totalorder %v613, %v31
      %v615 = vsel %vm614, 1, 0
      %616 = vset.pattern.permute.xlu0 0
      %617 = vperm.xlu0 %616, %v615
      %v618 = vpop.permute.xlu0 %617
      %vm619 = vcmp.eq.s32.totalorder %v618, 1
      %v620 = vsel %vm619, %v611, %v445
      %s621 = scalar_lea.vmem %s1, 72
      %v622 = vld [vmem:[%s621] sm:$0xff]
      %v623 = vld [vmem:[%s621 + $0x8] sm:$0xff]
      %v624 = vld [vmem:[%s621 + $0x10] sm:$0xff]
      %625 = vmatprep.subr.mxu0 %v33
      %626 = vmatpush1.msra.mxu0 %v32
      %627 = vmatprep.subr.mxu0 %v36
      %628 = vmatpush1.msra.mxu0 %v35
      %629 = vmatprep.subr.mxu0 %v39
      %630 = vmatpush1.msra.mxu0 %v38
      %631 = vmatprep.subr.mxu0 %v42
      %632 = vmatpush1.msra.mxu0 %v41
      %633 = vmatprep.subr.mxu0 %v45
      %634 = vmatpush1.msra.mxu0 %v44
      %635 = vmatprep.subr.mxu0 %v48
      %636 = vmatpush1.msra.mxu0 %v47
      %637 = vmatprep.subr.mxu0 %v51
      %638 = vmatpush1.msra.mxu0 %v50
      %639 = vmatprep.subr.mxu0 %v54
      %640 = vmatpush1.msra.mxu0 %v53
      %641 = vmatprep.subr.mxu0 %v57
      %642 = vmatpush1.msra.mxu0 %v56
      %643 = vmatprep.subr.mxu0 %v60
      %644 = vmatpush1.msra.mxu0 %v59
      %645 = vmatprep.subr.mxu0 %v63
      %646 = vmatpush1.msra.mxu0 %v62
      %647 = vmatprep.subr.mxu0 %v66
      %648 = vmatpush1.msra.mxu0 %v65
      %649 = vmatprep.subr.mxu0 %v69
      %650 = vmatpush1.msra.mxu0 %v68
      %651 = vmatprep.subr.mxu0 %v72
      %652 = vmatpush1.msra.mxu0 %v71
      %653 = vmatprep.subr.mxu0 %v75
      %654 = vmatpush1.msra.mxu0 %v74
      %655 = vmatprep.subr.mxu0 %v78
      %656 = vmatpush1.msra.mxu0 %v77
      %657 = vmatprep.subr.mxu0 0.0
      %658 = vmatpush1.msra.mxu0 0.0
      %659 = vmatprep.subr.mxu0 0.0
      %660 = vmatpush1.msra.mxu0 0.0
      %661 = vmatprep.subr.mxu0 0.0
      %662 = vmatpush1.msra.mxu0 0.0
      %663 = vmatprep.subr.mxu0 0.0
      %664 = vmatpush1.msra.mxu0 0.0
      %665 = vmatprep.subr.mxu0 0.0
      %666 = vmatpush1.msra.mxu0 0.0
      %667 = vmatprep.subr.mxu0 0.0
      %668 = vmatpush1.msra.mxu0 0.0
      %669 = vmatprep.subr.mxu0 0.0
      %670 = vmatpush1.msra.mxu0 0.0
      %671 = vmatprep.subr.mxu0 0.0
      %672 = vmatpush1.msra.mxu0 0.0
      %673 = vmatprep.subr.mxu0 0.0
      %674 = vmatpush1.msra.mxu0 0.0
      %675 = vmatprep.subr.mxu0 0.0
      %676 = vmatpush1.msra.mxu0 0.0
      %677 = vmatprep.subr.mxu0 0.0
      %678 = vmatpush1.msra.mxu0 0.0
      %679 = vmatprep.subr.mxu0 0.0
      %680 = vmatpush1.msra.mxu0 0.0
      %681 = vmatprep.subr.mxu0 0.0
      %682 = vmatpush1.msra.mxu0 0.0
      %683 = vmatprep.subr.mxu0 0.0
      %684 = vmatpush1.msra.mxu0 0.0
      %685 = vmatprep.subr.mxu0 0.0
      %686 = vmatpush1.msra.mxu0 0.0
      %687 = vmatprep.subr.mxu0 0.0
      %688 = vmatpush1.msra.mxu0 0.0
      %689 = vmatprep.mubr.f32.mxu0 0.0
      %690 = vmatmul.mubr.f32.gmra.mrb[0].mxu0 %v620
      %v691 = vpop.f32.mrb[0].mxu0
      %v692 = vadd.f32 %v89, %v691
      %v693 = vpop.f32.mrb[0].mxu0
      %v694 = vadd.f32 %v93, %v693
      %695 = vdwg.mxu0
      %696 = vmatprep.subr.mxu0 0.0
      %697 = vmatpush1.msra.mxu0 %v34
      %698 = vmatprep.subr.mxu0 0.0
      %699 = vmatpush1.msra.mxu0 %v37
      %700 = vmatprep.subr.mxu0 0.0
      %701 = vmatpush1.msra.mxu0 %v40
      %702 = vmatprep.subr.mxu0 0.0
      %703 = vmatpush1.msra.mxu0 %v43
      %704 = vmatprep.subr.mxu0 0.0
      %705 = vmatpush1.msra.mxu0 %v46
      %706 = vmatprep.subr.mxu0 0.0
      %707 = vmatpush1.msra.mxu0 %v49
      %708 = vmatprep.subr.mxu0 0.0
      %709 = vmatpush1.msra.mxu0 %v52
      %710 = vmatprep.subr.mxu0 0.0
      %711 = vmatpush1.msra.mxu0 %v55
      %712 = vmatprep.subr.mxu0 0.0
      %713 = vmatpush1.msra.mxu0 %v58
      %714 = vmatprep.subr.mxu0 0.0
      %715 = vmatpush1.msra.mxu0 %v61
      %716 = vmatprep.subr.mxu0 0.0
      %717 = vmatpush1.msra.mxu0 %v64
      %718 = vmatprep.subr.mxu0 0.0
      %719 = vmatpush1.msra.mxu0 %v67
      %720 = vmatprep.subr.mxu0 0.0
      %721 = vmatpush1.msra.mxu0 %v70
      %722 = vmatprep.subr.mxu0 0.0
      %723 = vmatpush1.msra.mxu0 %v73
      %724 = vmatprep.subr.mxu0 0.0
      %725 = vmatpush1.msra.mxu0 %v76
      %726 = vmatprep.subr.mxu0 0.0
      %727 = vmatpush1.msra.mxu0 %v79
      %728 = vmatprep.subr.mxu0 0.0
      %729 = vmatpush1.msra.mxu0 0.0
      %730 = vmatprep.subr.mxu0 0.0
      %731 = vmatpush1.msra.mxu0 0.0
      %732 = vmatprep.subr.mxu0 0.0
      %733 = vmatpush1.msra.mxu0 0.0
      %734 = vmatprep.subr.mxu0 0.0
      %735 = vmatpush1.msra.mxu0 0.0
      %736 = vmatprep.subr.mxu0 0.0
      %737 = vmatpush1.msra.mxu0 0.0
      %738 = vmatprep.subr.mxu0 0.0
      %739 = vmatpush1.msra.mxu0 0.0
      %740 = vmatprep.subr.mxu0 0.0
      %741 = vmatpush1.msra.mxu0 0.0
      %742 = vmatprep.subr.mxu0 0.0
      %743 = vmatpush1.msra.mxu0 0.0
      %744 = vmatprep.subr.mxu0 0.0
      %745 = vmatpush1.msra.mxu0 0.0
      %746 = vmatprep.subr.mxu0 0.0
      %747 = vmatpush1.msra.mxu0 0.0
      %748 = vmatprep.subr.mxu0 0.0
      %749 = vmatpush1.msra.mxu0 0.0
      %750 = vmatprep.subr.mxu0 0.0
      %751 = vmatpush1.msra.mxu0 0.0
      %752 = vmatprep.subr.mxu0 0.0
      %753 = vmatpush1.msra.mxu0 0.0
      %754 = vmatprep.subr.mxu0 0.0
      %755 = vmatpush1.msra.mxu0 0.0
      %756 = vmatprep.subr.mxu0 0.0
      %757 = vmatpush1.msra.mxu0 0.0
      %758 = vmatprep.subr.mxu0 0.0
      %759 = vmatpush1.msra.mxu0 0.0
      %760 = vmatprep.mubr.f32.mxu0 0.0
      %761 = vmatmul.mubr.f32.gmra.mrb[0].mxu0 %v620
      %v762 = vpop.f32.mrb[0].mxu0
      %v763 = vadd.f32 %v97, %v762
      %v764 = vpop.f32.mrb[0].mxu0
      %765 = vdwg.mxu0
      %v766 = vadd.f32 %v622, %v692
      %v767 = vxor.u32 %v766, 2147483648
      %v768 = vmul.f32 %v767, 1.442695
      %v769 = vpow.pop %v768
      %v770 = vadd.f32 %v769, 1.0
      %v771 = vrcp.pop %v770
      %v772 = vmul.f32 1.0, %v771
      %v773 = vadd.f32 %v623, %v694
      %v774 = vxor.u32 %v773, 2147483648
      %v775 = vmul.f32 %v774, 1.442695
      %v776 = vpow.pop %v775
      %v777 = vadd.f32 %v776, 1.0
      %v778 = vrcp.pop %v777
      %v779 = vmul.f32 1.0, %v778
      %v780 = vmul.f32 %v772, %v763
      %v781 = vadd.f32 %v624, %v780
      %v782 = vtanh.pop %v781
      %v783 = vsub.f32 1.0, %v779
      %v784 = vmul.f32 %v783, %v782
      %v785 = vmul.f32 %v779, %v620
      %v786 = vadd.f32 %v784, %v785
      %s787 = sadd.s32 %s25, 3
      %v788 = vstv %s787
      %vm789 = vcmp.lt.s32.totalorder %v788, %v31
      %v790 = vsel %vm789, 1, 0
      %791 = vset.pattern.permute.xlu0 0
      %792 = vperm.xlu0 %791, %v790
      %v793 = vpop.permute.xlu0 %792
      %vm794 = vcmp.eq.s32.totalorder %v793, 1
      %v795 = vsel %vm794, %v786, %v620
      %s796 = scalar_lea.vmem %s1, 96
      %v797 = vld [vmem:[%s796] sm:$0xff]
      %v798 = vld [vmem:[%s796 + $0x8] sm:$0xff]
      %v799 = vld [vmem:[%s796 + $0x10] sm:$0xff]
      %800 = vmatprep.subr.mxu0 %v33
      %801 = vmatpush1.msra.mxu0 %v32
      %802 = vmatprep.subr.mxu0 %v36
      %803 = vmatpush1.msra.mxu0 %v35
      %804 = vmatprep.subr.mxu0 %v39
      %805 = vmatpush1.msra.mxu0 %v38
      %806 = vmatprep.subr.mxu0 %v42
      %807 = vmatpush1.msra.mxu0 %v41
      %808 = vmatprep.subr.mxu0 %v45
      %809 = vmatpush1.msra.mxu0 %v44
      %810 = vmatprep.subr.mxu0 %v48
      %811 = vmatpush1.msra.mxu0 %v47
      %812 = vmatprep.subr.mxu0 %v51
      %813 = vmatpush1.msra.mxu0 %v50
      %814 = vmatprep.subr.mxu0 %v54
      %815 = vmatpush1.msra.mxu0 %v53
      %816 = vmatprep.subr.mxu0 %v57
      %817 = vmatpush1.msra.mxu0 %v56
      %818 = vmatprep.subr.mxu0 %v60
      %819 = vmatpush1.msra.mxu0 %v59
      %820 = vmatprep.subr.mxu0 %v63
      %821 = vmatpush1.msra.mxu0 %v62
      %822 = vmatprep.subr.mxu0 %v66
      %823 = vmatpush1.msra.mxu0 %v65
      %824 = vmatprep.subr.mxu0 %v69
      %825 = vmatpush1.msra.mxu0 %v68
      %826 = vmatprep.subr.mxu0 %v72
      %827 = vmatpush1.msra.mxu0 %v71
      %828 = vmatprep.subr.mxu0 %v75
      %829 = vmatpush1.msra.mxu0 %v74
      %830 = vmatprep.subr.mxu0 %v78
      %831 = vmatpush1.msra.mxu0 %v77
      %832 = vmatprep.subr.mxu0 0.0
      %833 = vmatpush1.msra.mxu0 0.0
      %834 = vmatprep.subr.mxu0 0.0
      %835 = vmatpush1.msra.mxu0 0.0
      %836 = vmatprep.subr.mxu0 0.0
      %837 = vmatpush1.msra.mxu0 0.0
      %838 = vmatprep.subr.mxu0 0.0
      %839 = vmatpush1.msra.mxu0 0.0
      %840 = vmatprep.subr.mxu0 0.0
      %841 = vmatpush1.msra.mxu0 0.0
      %842 = vmatprep.subr.mxu0 0.0
      %843 = vmatpush1.msra.mxu0 0.0
      %844 = vmatprep.subr.mxu0 0.0
      %845 = vmatpush1.msra.mxu0 0.0
      %846 = vmatprep.subr.mxu0 0.0
      %847 = vmatpush1.msra.mxu0 0.0
      %848 = vmatprep.subr.mxu0 0.0
      %849 = vmatpush1.msra.mxu0 0.0
      %850 = vmatprep.subr.mxu0 0.0
      %851 = vmatpush1.msra.mxu0 0.0
      %852 = vmatprep.subr.mxu0 0.0
      %853 = vmatpush1.msra.mxu0 0.0
      %854 = vmatprep.subr.mxu0 0.0
      %855 = vmatpush1.msra.mxu0 0.0
      %856 = vmatprep.subr.mxu0 0.0
      %857 = vmatpush1.msra.mxu0 0.0
      %858 = vmatprep.subr.mxu0 0.0
      %859 = vmatpush1.msra.mxu0 0.0
      %860 = vmatprep.subr.mxu0 0.0
      %861 = vmatpush1.msra.mxu0 0.0
      %862 = vmatprep.subr.mxu0 0.0
      %863 = vmatpush1.msra.mxu0 0.0
      %864 = vmatprep.mubr.f32.mxu0 0.0
      %865 = vmatmul.mubr.f32.gmra.mrb[0].mxu0 %v795
      %v866 = vpop.f32.mrb[0].mxu0
      %v867 = vadd.f32 %v89, %v866
      %v868 = vpop.f32.mrb[0].mxu0
      %v869 = vadd.f32 %v93, %v868
      %870 = vdwg.mxu0
      %871 = vmatprep.subr.mxu0 0.0
      %872 = vmatpush1.msra.mxu0 %v34
      %873 = vmatprep.subr.mxu0 0.0
      %874 = vmatpush1.msra.mxu0 %v37
      %875 = vmatprep.subr.mxu0 0.0
      %876 = vmatpush1.msra.mxu0 %v40
      %877 = vmatprep.subr.mxu0 0.0
      %878 = vmatpush1.msra.mxu0 %v43
      %879 = vmatprep.subr.mxu0 0.0
      %880 = vmatpush1.msra.mxu0 %v46
      %881 = vmatprep.subr.mxu0 0.0
      %882 = vmatpush1.msra.mxu0 %v49
      %883 = vmatprep.subr.mxu0 0.0
      %884 = vmatpush1.msra.mxu0 %v52
      %885 = vmatprep.subr.mxu0 0.0
      %886 = vmatpush1.msra.mxu0 %v55
      %887 = vmatprep.subr.mxu0 0.0
      %888 = vmatpush1.msra.mxu0 %v58
      %889 = vmatprep.subr.mxu0 0.0
      %890 = vmatpush1.msra.mxu0 %v61
      %891 = vmatprep.subr.mxu0 0.0
      %892 = vmatpush1.msra.mxu0 %v64
      %893 = vmatprep.subr.mxu0 0.0
      %894 = vmatpush1.msra.mxu0 %v67
      %895 = vmatprep.subr.mxu0 0.0
      %896 = vmatpush1.msra.mxu0 %v70
      %897 = vmatprep.subr.mxu0 0.0
      %898 = vmatpush1.msra.mxu0 %v73
      %899 = vmatprep.subr.mxu0 0.0
      %900 = vmatpush1.msra.mxu0 %v76
      %901 = vmatprep.subr.mxu0 0.0
      %902 = vmatpush1.msra.mxu0 %v79
      %903 = vmatprep.subr.mxu0 0.0
      %904 = vmatpush1.msra.mxu0 0.0
      %905 = vmatprep.subr.mxu0 0.0
      %906 = vmatpush1.msra.mxu0 0.0
      %907 = vmatprep.subr.mxu0 0.0
      %908 = vmatpush1.msra.mxu0 0.0
      %909 = vmatprep.subr.mxu0 0.0
      %910 = vmatpush1.msra.mxu0 0.0
      %911 = vmatprep.subr.mxu0 0.0
      %912 = vmatpush1.msra.mxu0 0.0
      %913 = vmatprep.subr.mxu0 0.0
      %914 = vmatpush1.msra.mxu0 0.0
      %915 = vmatprep.subr.mxu0 0.0
      %916 = vmatpush1.msra.mxu0 0.0
      %917 = vmatprep.subr.mxu0 0.0
      %918 = vmatpush1.msra.mxu0 0.0
      %919 = vmatprep.subr.mxu0 0.0
      %920 = vmatpush1.msra.mxu0 0.0
      %921 = vmatprep.subr.mxu0 0.0
      %922 = vmatpush1.msra.mxu0 0.0
      %923 = vmatprep.subr.mxu0 0.0
      %924 = vmatpush1.msra.mxu0 0.0
      %925 = vmatprep.subr.mxu0 0.0
      %926 = vmatpush1.msra.mxu0 0.0
      %927 = vmatprep.subr.mxu0 0.0
      %928 = vmatpush1.msra.mxu0 0.0
      %929 = vmatprep.subr.mxu0 0.0
      %930 = vmatpush1.msra.mxu0 0.0
      %931 = vmatprep.subr.mxu0 0.0
      %932 = vmatpush1.msra.mxu0 0.0
      %933 = vmatprep.subr.mxu0 0.0
      %934 = vmatpush1.msra.mxu0 0.0
      %935 = vmatprep.mubr.f32.mxu0 0.0
      %936 = vmatmul.mubr.f32.gmra.mrb[0].mxu0 %v795
      %v937 = vpop.f32.mrb[0].mxu0
      %v938 = vadd.f32 %v97, %v937
      %v939 = vpop.f32.mrb[0].mxu0
      %940 = vdwg.mxu0
      %v941 = vadd.f32 %v797, %v867
      %v942 = vxor.u32 %v941, 2147483648
      %v943 = vmul.f32 %v942, 1.442695
      %v944 = vpow.pop %v943
      %v945 = vadd.f32 %v944, 1.0
      %v946 = vrcp.pop %v945
      %v947 = vmul.f32 1.0, %v946
      %v948 = vadd.f32 %v798, %v869
      %v949 = vxor.u32 %v948, 2147483648
      %v950 = vmul.f32 %v949, 1.442695
      %v951 = vpow.pop %v950
      %v952 = vadd.f32 %v951, 1.0
      %v953 = vrcp.pop %v952
      %v954 = vmul.f32 1.0, %v953
      %v955 = vmul.f32 %v947, %v938
      %v956 = vadd.f32 %v799, %v955
      %v957 = vtanh.pop %v956
      %v958 = vsub.f32 1.0, %v954
      %v959 = vmul.f32 %v958, %v957
      %v960 = vmul.f32 %v954, %v795
      %v961 = vadd.f32 %v959, %v960
      %s962 = sadd.s32 %s25, 4
      %v963 = vstv %s962
      %vm964 = vcmp.lt.s32.totalorder %v963, %v31
      %v965 = vsel %vm964, 1, 0
      %966 = vset.pattern.permute.xlu0 0
      %967 = vperm.xlu0 %966, %v965
      %v968 = vpop.permute.xlu0 %967
      %vm969 = vcmp.eq.s32.totalorder %v968, 1
      %v970 = vsel %vm969, %v961, %v795
      %s971 = scalar_lea.vmem %s1, 120
      %v972 = vld [vmem:[%s971] sm:$0xff]
      %v973 = vld [vmem:[%s971 + $0x8] sm:$0xff]
      %v974 = vld [vmem:[%s971 + $0x10] sm:$0xff]
      %975 = vmatprep.subr.mxu0 %v33
      %976 = vmatpush1.msra.mxu0 %v32
      %977 = vmatprep.subr.mxu0 %v36
      %978 = vmatpush1.msra.mxu0 %v35
      %979 = vmatprep.subr.mxu0 %v39
      %980 = vmatpush1.msra.mxu0 %v38
      %981 = vmatprep.subr.mxu0 %v42
      %982 = vmatpush1.msra.mxu0 %v41
      %983 = vmatprep.subr.mxu0 %v45
      %984 = vmatpush1.msra.mxu0 %v44
      %985 = vmatprep.subr.mxu0 %v48
      %986 = vmatpush1.msra.mxu0 %v47
      %987 = vmatprep.subr.mxu0 %v51
      %988 = vmatpush1.msra.mxu0 %v50
      %989 = vmatprep.subr.mxu0 %v54
      %990 = vmatpush1.msra.mxu0 %v53
      %991 = vmatprep.subr.mxu0 %v57
      %992 = vmatpush1.msra.mxu0 %v56
      %993 = vmatprep.subr.mxu0 %v60
      %994 = vmatpush1.msra.mxu0 %v59
      %995 = vmatprep.subr.mxu0 %v63
      %996 = vmatpush1.msra.mxu0 %v62
      %997 = vmatprep.subr.mxu0 %v66
      %998 = vmatpush1.msra.mxu0 %v65
      %999 = vmatprep.subr.mxu0 %v69
      %1000 = vmatpush1.msra.mxu0 %v68
      %1001 = vmatprep.subr.mxu0 %v72
      %1002 = vmatpush1.msra.mxu0 %v71
      %1003 = vmatprep.subr.mxu0 %v75
      %1004 = vmatpush1.msra.mxu0 %v74
      %1005 = vmatprep.subr.mxu0 %v78
      %1006 = vmatpush1.msra.mxu0 %v77
      %1007 = vmatprep.subr.mxu0 0.0
      %1008 = vmatpush1.msra.mxu0 0.0
      %1009 = vmatprep.subr.mxu0 0.0
      %1010 = vmatpush1.msra.mxu0 0.0
      %1011 = vmatprep.subr.mxu0 0.0
      %1012 = vmatpush1.msra.mxu0 0.0
      %1013 = vmatprep.subr.mxu0 0.0
      %1014 = vmatpush1.msra.mxu0 0.0
      %1015 = vmatprep.subr.mxu0 0.0
      %1016 = vmatpush1.msra.mxu0 0.0
      %1017 = vmatprep.subr.mxu0 0.0
      %1018 = vmatpush1.msra.mxu0 0.0
      %1019 = vmatprep.subr.mxu0 0.0
      %1020 = vmatpush1.msra.mxu0 0.0
      %1021 = vmatprep.subr.mxu0 0.0
      %1022 = vmatpush1.msra.mxu0 0.0
      %1023 = vmatprep.subr.mxu0 0.0
      %1024 = vmatpush1.msra.mxu0 0.0
      %1025 = vmatprep.subr.mxu0 0.0
      %1026 = vmatpush1.msra.mxu0 0.0
      %1027 = vmatprep.subr.mxu0 0.0
      %1028 = vmatpush1.msra.mxu0 0.0
      %1029 = vmatprep.subr.mxu0 0.0
      %1030 = vmatpush1.msra.mxu0 0.0
      %1031 = vmatprep.subr.mxu0 0.0
      %1032 = vmatpush1.msra.mxu0 0.0
      %1033 = vmatprep.subr.mxu0 0.0
      %1034 = vmatpush1.msra.mxu0 0.0
      %1035 = vmatprep.subr.mxu0 0.0
      %1036 = vmatpush1.msra.mxu0 0.0
      %1037 = vmatprep.subr.mxu0 0.0
      %1038 = vmatpush1.msra.mxu0 0.0
      %1039 = vmatprep.mubr.f32.mxu0 0.0
      %1040 = vmatmul.mubr.f32.gmra.mrb[0].mxu0 %v970
      %v1041 = vpop.f32.mrb[0].mxu0
      %v1042 = vadd.f32 %v89, %v1041
      %v1043 = vpop.f32.mrb[0].mxu0
      %v1044 = vadd.f32 %v93, %v1043
      %1045 = vdwg.mxu0
      %1046 = vmatprep.subr.mxu0 0.0
      %1047 = vmatpush1.msra.mxu0 %v34
      %1048 = vmatprep.subr.mxu0 0.0
      %1049 = vmatpush1.msra.mxu0 %v37
      %1050 = vmatprep.subr.mxu0 0.0
      %1051 = vmatpush1.msra.mxu0 %v40
      %1052 = vmatprep.subr.mxu0 0.0
      %1053 = vmatpush1.msra.mxu0 %v43
      %1054 = vmatprep.subr.mxu0 0.0
      %1055 = vmatpush1.msra.mxu0 %v46
      %1056 = vmatprep.subr.mxu0 0.0
      %1057 = vmatpush1.msra.mxu0 %v49
      %1058 = vmatprep.subr.mxu0 0.0
      %1059 = vmatpush1.msra.mxu0 %v52
      %1060 = vmatprep.subr.mxu0 0.0
      %1061 = vmatpush1.msra.mxu0 %v55
      %1062 = vmatprep.subr.mxu0 0.0
      %1063 = vmatpush1.msra.mxu0 %v58
      %1064 = vmatprep.subr.mxu0 0.0
      %1065 = vmatpush1.msra.mxu0 %v61
      %1066 = vmatprep.subr.mxu0 0.0
      %1067 = vmatpush1.msra.mxu0 %v64
      %1068 = vmatprep.subr.mxu0 0.0
      %1069 = vmatpush1.msra.mxu0 %v67
      %1070 = vmatprep.subr.mxu0 0.0
      %1071 = vmatpush1.msra.mxu0 %v70
      %1072 = vmatprep.subr.mxu0 0.0
      %1073 = vmatpush1.msra.mxu0 %v73
      %1074 = vmatprep.subr.mxu0 0.0
      %1075 = vmatpush1.msra.mxu0 %v76
      %1076 = vmatprep.subr.mxu0 0.0
      %1077 = vmatpush1.msra.mxu0 %v79
      %1078 = vmatprep.subr.mxu0 0.0
      %1079 = vmatpush1.msra.mxu0 0.0
      %1080 = vmatprep.subr.mxu0 0.0
      %1081 = vmatpush1.msra.mxu0 0.0
      %1082 = vmatprep.subr.mxu0 0.0
      %1083 = vmatpush1.msra.mxu0 0.0
      %1084 = vmatprep.subr.mxu0 0.0
      %1085 = vmatpush1.msra.mxu0 0.0
      %1086 = vmatprep.subr.mxu0 0.0
      %1087 = vmatpush1.msra.mxu0 0.0
      %1088 = vmatprep.subr.mxu0 0.0
      %1089 = vmatpush1.msra.mxu0 0.0
      %1090 = vmatprep.subr.mxu0 0.0
      %1091 = vmatpush1.msra.mxu0 0.0
      %1092 = vmatprep.subr.mxu0 0.0
      %1093 = vmatpush1.msra.mxu0 0.0
      %1094 = vmatprep.subr.mxu0 0.0
      %1095 = vmatpush1.msra.mxu0 0.0
      %1096 = vmatprep.subr.mxu0 0.0
      %1097 = vmatpush1.msra.mxu0 0.0
      %1098 = vmatprep.subr.mxu0 0.0
      %1099 = vmatpush1.msra.mxu0 0.0
      %1100 = vmatprep.subr.mxu0 0.0
      %1101 = vmatpush1.msra.mxu0 0.0
      %1102 = vmatprep.subr.mxu0 0.0
      %1103 = vmatpush1.msra.mxu0 0.0
      %1104 = vmatprep.subr.mxu0 0.0
      %1105 = vmatpush1.msra.mxu0 0.0
      %1106 = vmatprep.subr.mxu0 0.0
      %1107 = vmatpush1.msra.mxu0 0.0
      %1108 = vmatprep.subr.mxu0 0.0
      %1109 = vmatpush1.msra.mxu0 0.0
      %1110 = vmatprep.mubr.f32.mxu0 0.0
      %1111 = vmatmul.mubr.f32.gmra.mrb[0].mxu0 %v970
      %v1112 = vpop.f32.mrb[0].mxu0
      %v1113 = vadd.f32 %v97, %v1112
      %v1114 = vpop.f32.mrb[0].mxu0
      %1115 = vdwg.mxu0
      %v1116 = vadd.f32 %v972, %v1042
      %v1117 = vxor.u32 %v1116, 2147483648
      %v1118 = vmul.f32 %v1117, 1.442695
      %v1119 = vpow.pop %v1118
      %v1120 = vadd.f32 %v1119, 1.0
      %v1121 = vrcp.pop %v1120
      %v1122 = vmul.f32 1.0, %v1121
      %v1123 = vadd.f32 %v973, %v1044
      %v1124 = vxor.u32 %v1123, 2147483648
      %v1125 = vmul.f32 %v1124, 1.442695
      %v1126 = vpow.pop %v1125
      %v1127 = vadd.f32 %v1126, 1.0
      %v1128 = vrcp.pop %v1127
      %v1129 = vmul.f32 1.0, %v1128
      %v1130 = vmul.f32 %v1122, %v1113
      %v1131 = vadd.f32 %v974, %v1130
      %v1132 = vtanh.pop %v1131
      %v1133 = vsub.f32 1.0, %v1129
      %v1134 = vmul.f32 %v1133, %v1132
      %v1135 = vmul.f32 %v1129, %v970
      %v1136 = vadd.f32 %v1134, %v1135
      %s1137 = sadd.s32 %s25, 5
      %v1138 = vstv %s1137
      %vm1139 = vcmp.lt.s32.totalorder %v1138, %v31
      %v1140 = vsel %vm1139, 1, 0
      %1141 = vset.pattern.permute.xlu0 0
      %1142 = vperm.xlu0 %1141, %v1140
      %v1143 = vpop.permute.xlu0 %1142
      %vm1144 = vcmp.eq.s32.totalorder %v1143, 1
      %v1145 = vsel %vm1144, %v1136, %v970
      %s1146 = scalar_lea.vmem %s1, 144
      %v1147 = vld [vmem:[%s1146] sm:$0xff]
      %v1148 = vld [vmem:[%s1146 + $0x8] sm:$0xff]
      %v1149 = vld [vmem:[%s1146 + $0x10] sm:$0xff]
      %1150 = vmatprep.subr.mxu0 %v33
      %1151 = vmatpush1.msra.mxu0 %v32
      %1152 = vmatprep.subr.mxu0 %v36
      %1153 = vmatpush1.msra.mxu0 %v35
      %1154 = vmatprep.subr.mxu0 %v39
      %1155 = vmatpush1.msra.mxu0 %v38
      %1156 = vmatprep.subr.mxu0 %v42
      %1157 = vmatpush1.msra.mxu0 %v41
      %1158 = vmatprep.subr.mxu0 %v45
      %1159 = vmatpush1.msra.mxu0 %v44
      %1160 = vmatprep.subr.mxu0 %v48
      %1161 = vmatpush1.msra.mxu0 %v47
      %1162 = vmatprep.subr.mxu0 %v51
      %1163 = vmatpush1.msra.mxu0 %v50
      %1164 = vmatprep.subr.mxu0 %v54
      %1165 = vmatpush1.msra.mxu0 %v53
      %1166 = vmatprep.subr.mxu0 %v57
      %1167 = vmatpush1.msra.mxu0 %v56
      %1168 = vmatprep.subr.mxu0 %v60
      %1169 = vmatpush1.msra.mxu0 %v59
      %1170 = vmatprep.subr.mxu0 %v63
      %1171 = vmatpush1.msra.mxu0 %v62
      %1172 = vmatprep.subr.mxu0 %v66
      %1173 = vmatpush1.msra.mxu0 %v65
      %1174 = vmatprep.subr.mxu0 %v69
      %1175 = vmatpush1.msra.mxu0 %v68
      %1176 = vmatprep.subr.mxu0 %v72
      %1177 = vmatpush1.msra.mxu0 %v71
      %1178 = vmatprep.subr.mxu0 %v75
      %1179 = vmatpush1.msra.mxu0 %v74
      %1180 = vmatprep.subr.mxu0 %v78
      %1181 = vmatpush1.msra.mxu0 %v77
      %1182 = vmatprep.subr.mxu0 0.0
      %1183 = vmatpush1.msra.mxu0 0.0
      %1184 = vmatprep.subr.mxu0 0.0
      %1185 = vmatpush1.msra.mxu0 0.0
      %1186 = vmatprep.subr.mxu0 0.0
      %1187 = vmatpush1.msra.mxu0 0.0
      %1188 = vmatprep.subr.mxu0 0.0
      %1189 = vmatpush1.msra.mxu0 0.0
      %1190 = vmatprep.subr.mxu0 0.0
      %1191 = vmatpush1.msra.mxu0 0.0
      %1192 = vmatprep.subr.mxu0 0.0
      %1193 = vmatpush1.msra.mxu0 0.0
      %1194 = vmatprep.subr.mxu0 0.0
      %1195 = vmatpush1.msra.mxu0 0.0
      %1196 = vmatprep.subr.mxu0 0.0
      %1197 = vmatpush1.msra.mxu0 0.0
      %1198 = vmatprep.subr.mxu0 0.0
      %1199 = vmatpush1.msra.mxu0 0.0
      %1200 = vmatprep.subr.mxu0 0.0
      %1201 = vmatpush1.msra.mxu0 0.0
      %1202 = vmatprep.subr.mxu0 0.0
      %1203 = vmatpush1.msra.mxu0 0.0
      %1204 = vmatprep.subr.mxu0 0.0
      %1205 = vmatpush1.msra.mxu0 0.0
      %1206 = vmatprep.subr.mxu0 0.0
      %1207 = vmatpush1.msra.mxu0 0.0
      %1208 = vmatprep.subr.mxu0 0.0
      %1209 = vmatpush1.msra.mxu0 0.0
      %1210 = vmatprep.subr.mxu0 0.0
      %1211 = vmatpush1.msra.mxu0 0.0
      %1212 = vmatprep.subr.mxu0 0.0
      %1213 = vmatpush1.msra.mxu0 0.0
      %1214 = vmatprep.mubr.f32.mxu0 0.0
      %1215 = vmatmul.mubr.f32.gmra.mrb[0].mxu0 %v1145
      %v1216 = vpop.f32.mrb[0].mxu0
      %v1217 = vadd.f32 %v89, %v1216
      %v1218 = vpop.f32.mrb[0].mxu0
      %v1219 = vadd.f32 %v93, %v1218
      %1220 = vdwg.mxu0
      %1221 = vmatprep.subr.mxu0 0.0
      %1222 = vmatpush1.msra.mxu0 %v34
      %1223 = vmatprep.subr.mxu0 0.0
      %1224 = vmatpush1.msra.mxu0 %v37
      %1225 = vmatprep.subr.mxu0 0.0
      %1226 = vmatpush1.msra.mxu0 %v40
      %1227 = vmatprep.subr.mxu0 0.0
      %1228 = vmatpush1.msra.mxu0 %v43
      %1229 = vmatprep.subr.mxu0 0.0
      %1230 = vmatpush1.msra.mxu0 %v46
      %1231 = vmatprep.subr.mxu0 0.0
      %1232 = vmatpush1.msra.mxu0 %v49
      %1233 = vmatprep.subr.mxu0 0.0
      %1234 = vmatpush1.msra.mxu0 %v52
      %1235 = vmatprep.subr.mxu0 0.0
      %1236 = vmatpush1.msra.mxu0 %v55
      %1237 = vmatprep.subr.mxu0 0.0
      %1238 = vmatpush1.msra.mxu0 %v58
      %1239 = vmatprep.subr.mxu0 0.0
      %1240 = vmatpush1.msra.mxu0 %v61
      %1241 = vmatprep.subr.mxu0 0.0
      %1242 = vmatpush1.msra.mxu0 %v64
      %1243 = vmatprep.subr.mxu0 0.0
      %1244 = vmatpush1.msra.mxu0 %v67
      %1245 = vmatprep.subr.mxu0 0.0
      %1246 = vmatpush1.msra.mxu0 %v70
      %1247 = vmatprep.subr.mxu0 0.0
      %1248 = vmatpush1.msra.mxu0 %v73
      %1249 = vmatprep.subr.mxu0 0.0
      %1250 = vmatpush1.msra.mxu0 %v76
      %1251 = vmatprep.subr.mxu0 0.0
      %1252 = vmatpush1.msra.mxu0 %v79
      %1253 = vmatprep.subr.mxu0 0.0
      %1254 = vmatpush1.msra.mxu0 0.0
      %1255 = vmatprep.subr.mxu0 0.0
      %1256 = vmatpush1.msra.mxu0 0.0
      %1257 = vmatprep.subr.mxu0 0.0
      %1258 = vmatpush1.msra.mxu0 0.0
      %1259 = vmatprep.subr.mxu0 0.0
      %1260 = vmatpush1.msra.mxu0 0.0
      %1261 = vmatprep.subr.mxu0 0.0
      %1262 = vmatpush1.msra.mxu0 0.0
      %1263 = vmatprep.subr.mxu0 0.0
      %1264 = vmatpush1.msra.mxu0 0.0
      %1265 = vmatprep.subr.mxu0 0.0
      %1266 = vmatpush1.msra.mxu0 0.0
      %1267 = vmatprep.subr.mxu0 0.0
      %1268 = vmatpush1.msra.mxu0 0.0
      %1269 = vmatprep.subr.mxu0 0.0
      %1270 = vmatpush1.msra.mxu0 0.0
      %1271 = vmatprep.subr.mxu0 0.0
      %1272 = vmatpush1.msra.mxu0 0.0
      %1273 = vmatprep.subr.mxu0 0.0
      %1274 = vmatpush1.msra.mxu0 0.0
      %1275 = vmatprep.subr.mxu0 0.0
      %1276 = vmatpush1.msra.mxu0 0.0
      %1277 = vmatprep.subr.mxu0 0.0
      %1278 = vmatpush1.msra.mxu0 0.0
      %1279 = vmatprep.subr.mxu0 0.0
      %1280 = vmatpush1.msra.mxu0 0.0
      %1281 = vmatprep.subr.mxu0 0.0
      %1282 = vmatpush1.msra.mxu0 0.0
      %1283 = vmatprep.subr.mxu0 0.0
      %1284 = vmatpush1.msra.mxu0 0.0
      %1285 = vmatprep.mubr.f32.mxu0 0.0
      %1286 = vmatmul.mubr.f32.gmra.mrb[0].mxu0 %v1145
      %v1287 = vpop.f32.mrb[0].mxu0
      %v1288 = vadd.f32 %v97, %v1287
      %v1289 = vpop.f32.mrb[0].mxu0
      %1290 = vdwg.mxu0
      %v1291 = vadd.f32 %v1147, %v1217
      %v1292 = vxor.u32 %v1291, 2147483648
      %v1293 = vmul.f32 %v1292, 1.442695
      %v1294 = vpow.pop %v1293
      %v1295 = vadd.f32 %v1294, 1.0
      %v1296 = vrcp.pop %v1295
      %v1297 = vmul.f32 1.0, %v1296
      %v1298 = vadd.f32 %v1148, %v1219
      %v1299 = vxor.u32 %v1298, 2147483648
      %v1300 = vmul.f32 %v1299, 1.442695
      %v1301 = vpow.pop %v1300
      %v1302 = vadd.f32 %v1301, 1.0
      %v1303 = vrcp.pop %v1302
      %v1304 = vmul.f32 1.0, %v1303
      %v1305 = vmul.f32 %v1297, %v1288
      %v1306 = vadd.f32 %v1149, %v1305
      %v1307 = vtanh.pop %v1306
      %v1308 = vsub.f32 1.0, %v1304
      %v1309 = vmul.f32 %v1308, %v1307
      %v1310 = vmul.f32 %v1304, %v1145
      %v1311 = vadd.f32 %v1309, %v1310
      %s1312 = sadd.s32 %s25, 6
      %v1313 = vstv %s1312
      %vm1314 = vcmp.lt.s32.totalorder %v1313, %v31
      %v1315 = vsel %vm1314, 1, 0
      %1316 = vset.pattern.permute.xlu0 0
      %1317 = vperm.xlu0 %1316, %v1315
      %v1318 = vpop.permute.xlu0 %1317
      %vm1319 = vcmp.eq.s32.totalorder %v1318, 1
      %v1320 = vsel %vm1319, %v1311, %v1145
      %s1321 = scalar_lea.vmem %s1, 168
      %v1322 = vld [vmem:[%s1321] sm:$0xff]
      %v1323 = vld [vmem:[%s1321 + $0x8] sm:$0xff]
      %v1324 = vld [vmem:[%s1321 + $0x10] sm:$0xff]
      %1325 = vmatprep.subr.mxu0 %v33
      %1326 = vmatpush1.msra.mxu0 %v32
      %1327 = vmatprep.subr.mxu0 %v36
      %1328 = vmatpush1.msra.mxu0 %v35
      %1329 = vmatprep.subr.mxu0 %v39
      %1330 = vmatpush1.msra.mxu0 %v38
      %1331 = vmatprep.subr.mxu0 %v42
      %1332 = vmatpush1.msra.mxu0 %v41
      %1333 = vmatprep.subr.mxu0 %v45
      %1334 = vmatpush1.msra.mxu0 %v44
      %1335 = vmatprep.subr.mxu0 %v48
      %1336 = vmatpush1.msra.mxu0 %v47
      %1337 = vmatprep.subr.mxu0 %v51
      %1338 = vmatpush1.msra.mxu0 %v50
      %1339 = vmatprep.subr.mxu0 %v54
      %1340 = vmatpush1.msra.mxu0 %v53
      %1341 = vmatprep.subr.mxu0 %v57
      %1342 = vmatpush1.msra.mxu0 %v56
      %1343 = vmatprep.subr.mxu0 %v60
      %1344 = vmatpush1.msra.mxu0 %v59
      %1345 = vmatprep.subr.mxu0 %v63
      %1346 = vmatpush1.msra.mxu0 %v62
      %1347 = vmatprep.subr.mxu0 %v66
      %1348 = vmatpush1.msra.mxu0 %v65
      %1349 = vmatprep.subr.mxu0 %v69
      %1350 = vmatpush1.msra.mxu0 %v68
      %1351 = vmatprep.subr.mxu0 %v72
      %1352 = vmatpush1.msra.mxu0 %v71
      %1353 = vmatprep.subr.mxu0 %v75
      %1354 = vmatpush1.msra.mxu0 %v74
      %1355 = vmatprep.subr.mxu0 %v78
      %1356 = vmatpush1.msra.mxu0 %v77
      %1357 = vmatprep.subr.mxu0 0.0
      %1358 = vmatpush1.msra.mxu0 0.0
      %1359 = vmatprep.subr.mxu0 0.0
      %1360 = vmatpush1.msra.mxu0 0.0
      %1361 = vmatprep.subr.mxu0 0.0
      %1362 = vmatpush1.msra.mxu0 0.0
      %1363 = vmatprep.subr.mxu0 0.0
      %1364 = vmatpush1.msra.mxu0 0.0
      %1365 = vmatprep.subr.mxu0 0.0
      %1366 = vmatpush1.msra.mxu0 0.0
      %1367 = vmatprep.subr.mxu0 0.0
      %1368 = vmatpush1.msra.mxu0 0.0
      %1369 = vmatprep.subr.mxu0 0.0
      %1370 = vmatpush1.msra.mxu0 0.0
      %1371 = vmatprep.subr.mxu0 0.0
      %1372 = vmatpush1.msra.mxu0 0.0
      %1373 = vmatprep.subr.mxu0 0.0
      %1374 = vmatpush1.msra.mxu0 0.0
      %1375 = vmatprep.subr.mxu0 0.0
      %1376 = vmatpush1.msra.mxu0 0.0
      %1377 = vmatprep.subr.mxu0 0.0
      %1378 = vmatpush1.msra.mxu0 0.0
      %1379 = vmatprep.subr.mxu0 0.0
      %1380 = vmatpush1.msra.mxu0 0.0
      %1381 = vmatprep.subr.mxu0 0.0
      %1382 = vmatpush1.msra.mxu0 0.0
      %1383 = vmatprep.subr.mxu0 0.0
      %1384 = vmatpush1.msra.mxu0 0.0
      %1385 = vmatprep.subr.mxu0 0.0
      %1386 = vmatpush1.msra.mxu0 0.0
      %1387 = vmatprep.subr.mxu0 0.0
      %1388 = vmatpush1.msra.mxu0 0.0
      %1389 = vmatprep.mubr.f32.mxu0 0.0
      %1390 = vmatmul.mubr.f32.gmra.mrb[0].mxu0 %v1320
      %v1391 = vpop.f32.mrb[0].mxu0
      %v1392 = vadd.f32 %v89, %v1391
      %v1393 = vpop.f32.mrb[0].mxu0
      %v1394 = vadd.f32 %v93, %v1393
      %1395 = vdwg.mxu0
      %1396 = vmatprep.subr.mxu0 0.0
      %1397 = vmatpush1.msra.mxu0 %v34
      %1398 = vmatprep.subr.mxu0 0.0
      %1399 = vmatpush1.msra.mxu0 %v37
      %1400 = vmatprep.subr.mxu0 0.0
      %1401 = vmatpush1.msra.mxu0 %v40
      %1402 = vmatprep.subr.mxu0 0.0
      %1403 = vmatpush1.msra.mxu0 %v43
      %1404 = vmatprep.subr.mxu0 0.0
      %1405 = vmatpush1.msra.mxu0 %v46
      %1406 = vmatprep.subr.mxu0 0.0
      %1407 = vmatpush1.msra.mxu0 %v49
      %1408 = vmatprep.subr.mxu0 0.0
      %1409 = vmatpush1.msra.mxu0 %v52
      %1410 = vmatprep.subr.mxu0 0.0
      %1411 = vmatpush1.msra.mxu0 %v55
      %1412 = vmatprep.subr.mxu0 0.0
      %1413 = vmatpush1.msra.mxu0 %v58
      %1414 = vmatprep.subr.mxu0 0.0
      %1415 = vmatpush1.msra.mxu0 %v61
      %1416 = vmatprep.subr.mxu0 0.0
      %1417 = vmatpush1.msra.mxu0 %v64
      %1418 = vmatprep.subr.mxu0 0.0
      %1419 = vmatpush1.msra.mxu0 %v67
      %1420 = vmatprep.subr.mxu0 0.0
      %1421 = vmatpush1.msra.mxu0 %v70
      %1422 = vmatprep.subr.mxu0 0.0
      %1423 = vmatpush1.msra.mxu0 %v73
      %1424 = vmatprep.subr.mxu0 0.0
      %1425 = vmatpush1.msra.mxu0 %v76
      %1426 = vmatprep.subr.mxu0 0.0
      %1427 = vmatpush1.msra.mxu0 %v79
      %1428 = vmatprep.subr.mxu0 0.0
      %1429 = vmatpush1.msra.mxu0 0.0
      %1430 = vmatprep.subr.mxu0 0.0
      %1431 = vmatpush1.msra.mxu0 0.0
      %1432 = vmatprep.subr.mxu0 0.0
      %1433 = vmatpush1.msra.mxu0 0.0
      %1434 = vmatprep.subr.mxu0 0.0
      %1435 = vmatpush1.msra.mxu0 0.0
      %1436 = vmatprep.subr.mxu0 0.0
      %1437 = vmatpush1.msra.mxu0 0.0
      %1438 = vmatprep.subr.mxu0 0.0
      %1439 = vmatpush1.msra.mxu0 0.0
      %1440 = vmatprep.subr.mxu0 0.0
      %1441 = vmatpush1.msra.mxu0 0.0
      %1442 = vmatprep.subr.mxu0 0.0
      %1443 = vmatpush1.msra.mxu0 0.0
      %1444 = vmatprep.subr.mxu0 0.0
      %1445 = vmatpush1.msra.mxu0 0.0
      %1446 = vmatprep.subr.mxu0 0.0
      %1447 = vmatpush1.msra.mxu0 0.0
      %1448 = vmatprep.subr.mxu0 0.0
      %1449 = vmatpush1.msra.mxu0 0.0
      %1450 = vmatprep.subr.mxu0 0.0
      %1451 = vmatpush1.msra.mxu0 0.0
      %1452 = vmatprep.subr.mxu0 0.0
      %1453 = vmatpush1.msra.mxu0 0.0
      %1454 = vmatprep.subr.mxu0 0.0
      %1455 = vmatpush1.msra.mxu0 0.0
      %1456 = vmatprep.subr.mxu0 0.0
      %1457 = vmatpush1.msra.mxu0 0.0
      %1458 = vmatprep.subr.mxu0 0.0
      %1459 = vmatpush1.msra.mxu0 0.0
      %1460 = vmatprep.mubr.f32.mxu0 0.0
      %1461 = vmatmul.mubr.f32.gmra.mrb[0].mxu0 %v1320
      %v1462 = vpop.f32.mrb[0].mxu0
      %v1463 = vadd.f32 %v97, %v1462
      %v1464 = vpop.f32.mrb[0].mxu0
      %1465 = vdwg.mxu0
      %v1466 = vadd.f32 %v1322, %v1392
      %v1467 = vxor.u32 %v1466, 2147483648
      %v1468 = vmul.f32 %v1467, 1.442695
      %v1469 = vpow.pop %v1468
      %v1470 = vadd.f32 %v1469, 1.0
      %v1471 = vrcp.pop %v1470
      %v1472 = vmul.f32 1.0, %v1471
      %v1473 = vadd.f32 %v1323, %v1394
      %v1474 = vxor.u32 %v1473, 2147483648
      %v1475 = vmul.f32 %v1474, 1.442695
      %v1476 = vpow.pop %v1475
      %v1477 = vadd.f32 %v1476, 1.0
      %v1478 = vrcp.pop %v1477
      %v1479 = vmul.f32 1.0, %v1478
      %v1480 = vmul.f32 %v1472, %v1463
      %v1481 = vadd.f32 %v1324, %v1480
      %v1482 = vtanh.pop %v1481
      %v1483 = vsub.f32 1.0, %v1479
      %v1484 = vmul.f32 %v1483, %v1482
      %v1485 = vmul.f32 %v1479, %v1320
      %v1486 = vadd.f32 %v1484, %v1485
      %s1487 = sadd.s32 %s25, 7
      %v1488 = vstv %s1487
      %vm1489 = vcmp.lt.s32.totalorder %v1488, %v31
      %v1490 = vsel %vm1489, 1, 0
      %1491 = vset.pattern.permute.xlu0 0
      %1492 = vperm.xlu0 %1491, %v1490
      %v1493 = vpop.permute.xlu0 %1492
      %vm1494 = vcmp.eq.s32.totalorder %v1493, 1
      %v1495 = vsel %vm1494, %v1486, %v1320
      %1496 = vst [vmem:[#allocation4] sm:$0xff] %v1495
    $region25: #{g2p_encoder_forward.1} parent=1 // pred_fallthru
      _
    // Predicated region
    $region26: #{g2p_encoder_forward.1} parent=1 // pred_check
      _
    $region27: #{g2p_encoder_forward.1} parent=1 // pred_check_branch
      %1498 = sbr.rel (0) target = $region29
    $region28: #{g2p_encoder_forward.1} parent=1 // pred_region
      %s1500 = ssub.s32 128, 128
      %1501 = vsyncadd [#allocation5], %s1500
      %s1503 = sshll.u32 [#allocation4], 4
      %s1504 = int_to_ptr.vmem [resolvable:$true] %s1503
      %1506 = dma.vmem_to_hbm [thread:$0]  %s1504, 128, %s5, [#allocation5]
    $region29: #{g2p_encoder_forward.1} parent=1 // pred_fallthru
      _
    // Predicated region
    $region30: #{g2p_encoder_forward.1} parent=1 // pred_check
      _
    $region31: #{g2p_encoder_forward.1} parent=1 // pred_check_branch
      %1508 = sbr.rel (0) target = $region33
    $region32: #{g2p_encoder_forward.1} parent=1 // pred_region
      %1509 = dma.done [#allocation5], 128
    $region33: #{g2p_encoder_forward.1} parent=1 // pred_fallthru
      _
    %1510 = vsyncpa [#allocation5], 1

</llo_original>
